<compile_context>
chip_gen: v5e
topology: v5e:2x2
jax: 0.10.0
libtpu: 0.0.40
codegen_flags: <defaults>
</compile_context>

<pallas_src>
import functools
import math

import jax
import jax.numpy as jnp
from jax.experimental import pallas as pl
from jax.experimental.pallas import tpu as pltpu


def _layer_norm(x, w, b, eps):
    # One-pass LayerNorm: E[x] and E[x^2] (halves the cross-lane reductions vs two-pass).
    mu = jnp.mean(x, axis=-1, keepdims=True)
    ex2 = jnp.mean(x * x, axis=-1, keepdims=True)
    var = jnp.maximum(ex2 - mu * mu, 0.0)
    return (x - mu) * jax.lax.rsqrt(var + eps) * w + b


def _block_kernel(x_ref, ln1w_ref, ln1b_ref, qkvw_ref, projw_ref, projb_ref,
                  ln2w_ref, ln2b_ref, fc1w_ref, fc1b_ref, fc2w_ref, fc2b_ref,
                  out_ref, attn_buf_ref, *,
                  num_heads, head_dim, eps, n_real, ew_dtype):
    x = x_ref[0].astype(jnp.float32)                       # (Np, C)
    n_pad = x.shape[0]
    C = num_heads * head_dim

    # ---- LayerNorm 1 (f32, one-pass) ----
    xn = _layer_norm(x, ln1w_ref[...], ln1b_ref[...], eps)

    # ---- fused qkv projection: bf16 operands, f32 accumulation ----
    # (softmax scale already folded into the q-columns of the weight by prepare_params)
    qkv = jnp.dot(xn.astype(jnp.bfloat16), qkvw_ref[...],
                  preferred_element_type=jnp.float32)      # (Np, 3C) f32
    qkv = qkv.astype(jnp.bfloat16)
    q = qkv[:, 0:C]
    k = qkv[:, C:2 * C]
    v = qkv[:, 2 * C:3 * C]

    # Bias masking padded key positions out of the softmax (static: only emitted
    # when padding actually exists).
    if n_real < n_pad:
        col = jax.lax.broadcasted_iota(jnp.int32, (1, n_pad), 1)
        key_bias = jnp.where(col >= n_real, jnp.float32(-1e30), jnp.float32(0.0))
    else:
        key_bias = None

    dn_qkT = (((1,), (1,)), ((), ()))                      # q @ k^T (contract head_dim)
    # TODO(synk): if bundle dumps show XLU/vld pressure from the 64-lane-offset head
    # slices, consume q/k/v in 128-wide two-head slices instead.
    for h in range(num_heads):
        lo, hi = h * head_dim, (h + 1) * head_dim
        s = jax.lax.dot_general(q[:, lo:hi], k[:, lo:hi], dn_qkT,
                                preferred_element_type=jnp.float32)   # (Np, Np) f32
        if key_bias is not None:
            s = s + key_bias
        s = s - jnp.max(s, axis=-1, keepdims=True)
        # exp on bf16 scores on v6e/v7x (2x EUP rate), f32 on v5e/unknown.
        p = jnp.exp(s.astype(ew_dtype))                    # unnormalized probs, <= 1
        denom = jnp.sum(p.astype(jnp.float32), axis=-1, keepdims=True)
        inv = pl.reciprocal(denom, approx=True)            # (Np, 1) f32, EUP slot
        head_out = jnp.dot(p.astype(jnp.bfloat16), v[:, lo:hi],
                           preferred_element_type=jnp.float32)        # (Np, hd) f32
        # Normalize after P@V: Np*hd multiplies instead of Np*Np.
        head_out = head_out * inv
        attn_buf_ref[:, lo:hi] = head_out.astype(jnp.bfloat16)

    # Single full-K projection matmul (Np,C)@(C,C) — full MXU contraction depth.
    attn_out = jnp.dot(attn_buf_ref[...], projw_ref[...],
                       preferred_element_type=jnp.float32)            # (Np, C) f32
    x1 = x + attn_out + projb_ref[...]                     # residual 1

    # ---- LayerNorm 2 (f32, one-pass) ----
    x2n = _layer_norm(x1, ln2w_ref[...], ln2b_ref[...], eps)

    # ---- MLP: fc1 -> exact GELU -> fc2 (bf16 matmul operands, f32 accumulation) ----
    h1 = jnp.dot(x2n.astype(jnp.bfloat16), fc1w_ref[...],
                 preferred_element_type=jnp.float32) + fc1b_ref[...]  # (Np, H) f32
    inv_sqrt2 = jnp.float32(1.0 / math.sqrt(2.0))
    # TODO(synk): run the erf on bf16 h1 on v6e/v7x once Mosaic bf16 erf lowering is
    # confirmed; kept in f32 here for guaranteed compile.
    g = 0.5 * h1 * (1.0 + jax.lax.erf(h1 * inv_sqrt2))                # nn.GELU (exact)
    h2 = jnp.dot(g.astype(jnp.bfloat16), fc2w_ref[...],
                 preferred_element_type=jnp.float32) + fc2b_ref[...]  # (Np, C) f32

    out_ref[0] = (x1 + h2).astype(out_ref.dtype)           # residual 2


def _vmem_limit_bytes():
    """Per-generation scoped-VMEM budget (None -> keep compiler default)."""
    try:
        cap = pltpu.get_tpu_info().vmem_capacity_bytes     # 128 MiB v5e/v6e, 64 MiB v7x
    except Exception:
        return None
    # Leave headroom for the compiler's own scratch; cap at 100 MiB on 128 MiB chips.
    return int(min(cap - (8 << 20), 100 << 20))


def _elementwise_dtype():
    """bf16 elementwise/EUP math on v6e/v7x (2x rate), f32 on v5e/v4/unknown."""
    try:
        kind = jax.devices()[0].device_kind.lower()
    except Exception:
        return jnp.float32
    if "v6" in kind or "v7" in kind:
        return jnp.bfloat16
    return jnp.float32


def _round_up(n, m):
    return ((n + m - 1) // m) * m


def _const_spec(shape):
    """Grid-invariant operand: request a single pipeline buffer (no double-buffering)."""
    zeros = (0,) * len(shape)
    index_map = lambda b, _z=zeros: _z
    try:
        # Feature-detect pipeline_mode at construction time (cheap, no compile/run).
        return pl.BlockSpec(shape, index_map, pipeline_mode=pl.Buffered(1))
    except TypeError:
        return pl.BlockSpec(shape, index_map)


def prepare_params(params, *, num_heads):
    """One-time weight prep: fold softmax scale into q-columns, cast weights to bf16.

    Call once outside the step function so the per-layer forward does not re-cast
    or re-scale weights on every invocation.
    """
    C = params["qkv_w"].shape[0]
    head_dim = C // num_heads
    scale = head_dim ** (-0.5)
    f32 = lambda a: a.astype(jnp.float32)
    qkv_w = (params["qkv_w"].astype(jnp.float32)
             .at[:, :C].multiply(scale)
             .astype(jnp.bfloat16))
    return {
        "ln1_w": f32(params["ln1_w"]), "ln1_b": f32(params["ln1_b"]),
        "qkv_w": qkv_w,
        "proj_w": params["proj_w"].astype(jnp.bfloat16),
        "proj_b": f32(params["proj_b"]),
        "ln2_w": f32(params["ln2_w"]), "ln2_b": f32(params["ln2_b"]),
        "fc1_w": params["fc1_w"].astype(jnp.bfloat16), "fc1_b": f32(params["fc1_b"]),
        "fc2_w": params["fc2_w"].astype(jnp.bfloat16), "fc2_b": f32(params["fc2_b"]),
    }


def vit_block(x, p, *, num_heads, eps=1e-5):
    """x: (B, N, C) float32. p: output of prepare_params (bf16 weights, f32 LN/biases).

    Intended to be wrapped in jax.jit by the caller (no host sync inside).
    """
    B, N, C = x.shape
    assert C % num_heads == 0
    head_dim = C // num_heads
    H = p["fc1_w"].shape[1]

    # Lane/sublane-dense token padding: 128 for large N (e.g. ViT N=197 -> 256),
    # 16 (bf16 sublane packing) for small N. Padded keys are masked in-kernel.
    n_pad = _round_up(N, 128) if N >= 128 else _round_up(N, 16)
    x_in = x if n_pad == N else jnp.pad(x, ((0, 0), (0, n_pad - N), (0, 0)))

    kernel = functools.partial(_block_kernel, num_heads=num_heads, head_dim=head_dim,
                               eps=eps, n_real=N, ew_dtype=_elementwise_dtype())

    cp_kwargs = dict(dimension_semantics=("parallel",))
    vmem_limit = _vmem_limit_bytes()
    if vmem_limit is not None:
        cp_kwargs["vmem_limit_bytes"] = vmem_limit
    compiler_params = pltpu.CompilerParams(**cp_kwargs)

    # Advisory cost estimate so XLA schedules neighboring ops around the kernel.
    flops_per_b = (2 * n_pad * C * 3 * C          # qkv
                   + 4 * n_pad * n_pad * C        # q@kT + p@v over all heads
                   + 2 * n_pad * C * C            # proj
                   + 4 * n_pad * C * H)           # fc1 + fc2
    transc_per_b = n_pad * H + num_heads * n_pad * n_pad
    weight_bytes = 2 * (3 * C * C + C * C + 2 * C * H) + 4 * (6 * C + H)
    cost = pl.CostEstimate(flops=B * flops_per_b,
                           transcendentals=B * transc_per_b,
                           bytes_accessed=int(B * 2 * 4 * n_pad * C + weight_bytes))

    in_specs = [
        pl.BlockSpec((1, n_pad, C), lambda b: (b, 0, 0)),   # x
        _const_spec((1, C)),                                # ln1 weight
        _const_spec((1, C)),                                # ln1 bias
        _const_spec((C, 3 * C)),                            # qkv weight^T (q cols pre-scaled)
        _const_spec((C, C)),                                # proj weight^T
        _const_spec((1, C)),                                # proj bias
        _const_spec((1, C)),                                # ln2 weight
        _const_spec((1, C)),                                # ln2 bias
        _const_spec((C, H)),                                # fc1 weight^T
        _const_spec((1, H)),                                # fc1 bias
        _const_spec((H, C)),                                # fc2 weight^T
        _const_spec((1, C)),                                # fc2 bias
    ]
    # TODO(synk): on v7x, add a second "parallel" grid axis over query-row tiles so both
    # TensorCores get work when B == 1 (or B is odd).
    # TODO(synk): for ViT-Large/Huge on v7x (64 MiB VMEM), tile fc1/fc2 (and optionally
    # qkv) over the hidden dim via a grid axis or pltpu.emit_pipeline instead of keeping
    # the MLP weights fully resident.
    out = pl.pallas_call(
        kernel,
        out_shape=jax.ShapeDtypeStruct((B, n_pad, C), x.dtype),
        grid=(B,),
        in_specs=in_specs,
        out_specs=pl.BlockSpec((1, n_pad, C), lambda b: (b, 0, 0)),
        scratch_shapes=[pltpu.VMEM((n_pad, C), jnp.bfloat16)],   # stacked head outputs
        compiler_params=compiler_params,
        cost_estimate=cost,
    )(x_in,
      p["ln1_w"], p["ln1_b"],
      p["qkv_w"], p["proj_w"], p["proj_b"],
      p["ln2_w"], p["ln2_b"],
      p["fc1_w"], p["fc1_b"],
      p["fc2_w"], p["fc2_b"])

    return out if n_pad == N else out[:, :N, :]


def init_params(key, dim, num_heads, mlp_ratio=4.0):
    hidden = int(dim * mlp_ratio)
    ks = jax.random.split(key, 6)
    s = 0.02
    return {
        "ln1_w": jnp.ones((1, dim), jnp.float32),
        "ln1_b": jnp.zeros((1, dim), jnp.float32),
        # Stored pre-transposed as (in, out) so the kernel does x @ W directly.
        "qkv_w": (s * jax.random.normal(ks[0], (dim, 3 * dim))).astype(jnp.float32),
        "proj_w": (s * jax.random.normal(ks[1], (dim, dim))).astype(jnp.float32),
        "proj_b": (s * jax.random.normal(ks[2], (1, dim))).astype(jnp.float32),
        "ln2_w": jnp.ones((1, dim), jnp.float32),
        "ln2_b": jnp.zeros((1, dim), jnp.float32),
        "fc1_w": (s * jax.random.normal(ks[3], (dim, hidden))).astype(jnp.float32),
        "fc1_b": (s * jax.random.normal(ks[4], (1, hidden))).astype(jnp.float32),
        "fc2_w": (s * jax.random.normal(ks[5], (hidden, dim))).astype(jnp.float32),
        "fc2_b": jnp.zeros((1, dim), jnp.float32),
    }


def _reference_block(x, p, num_heads, eps=1e-5):
    """Pure-JAX f32 reference with identical math (for correctness check)."""
    B, N, C = x.shape
    hd = C // num_heads
    scale = hd ** (-0.5)

    def ln(v, w, b):
        mu = jnp.mean(v, axis=-1, keepdims=True)
        var = jnp.mean((v - mu) ** 2, axis=-1, keepdims=True)
        return (v - mu) / jnp.sqrt(var + eps) * w + b

    xn = ln(x, p["ln1_w"][0], p["ln1_b"][0])
    qkv = xn @ p["qkv_w"]                                     # (B, N, 3C)
    qkv = qkv.reshape(B, N, 3, num_heads, hd).transpose(2, 0, 3, 1, 4)
    q, k, v = qkv[0], qkv[1], qkv[2]                          # (B, H, N, hd)
    attn = jnp.einsum("bhnd,bhmd->bhnm", q, k) * scale
    attn = jax.nn.softmax(attn, axis=-1)
    o = jnp.einsum("bhnm,bhmd->bhnd", attn, v).transpose(0, 2, 1, 3).reshape(B, N, C)
    x1 = x + (o @ p["proj_w"] + p["proj_b"][0])
    x2n = ln(x1, p["ln2_w"][0], p["ln2_b"][0])
    h1 = x2n @ p["fc1_w"] + p["fc1_b"][0]
    h1 = 0.5 * h1 * (1.0 + jax.lax.erf(h1 / jnp.sqrt(2.0)))
    return x1 + (h1 @ p["fc2_w"] + p["fc2_b"][0])


if __name__ == "__main__":
    B, N, C = 2, 8, 32
    num_heads = 4
    key = jax.random.PRNGKey(0)
    kx, kp = jax.random.split(key)
    x = jax.random.normal(kx, (B, N, C), dtype=jnp.float32)
    params = init_params(kp, C, num_heads, mlp_ratio=4.0)

    # One-time weight prep (bf16 cast + folded softmax scale), jitted forward.
    prepared = prepare_params(params, num_heads=num_heads)
    fwd = jax.jit(functools.partial(vit_block, num_heads=num_heads))

    out = jax.block_until_ready(fwd(x, prepared))

    ref = _reference_block(x, params, num_heads)
    assert out.shape == (B, N, C)
    err = float(jnp.max(jnp.abs(out - ref)))
    ref_mag = float(jnp.max(jnp.abs(ref)))
    # bf16 matmul operands + approx softmax reciprocal -> looser tolerance than pure f32.
    assert err <= 2e-2 * max(1.0, ref_mag), f"mismatch vs reference: {err}"
    print("KERNEL_OK")
</pallas_src>

<mosaic_0001>
module attributes {stable_mosaic.version = 11 : i64} {
  func.func @_block_kernel(%arg0: i32, %arg1: memref<1x16x32xf32, #tpu.memory_space<vmem>>, %arg2: memref<1x32xf32, #tpu.memory_space<vmem>>, %arg3: memref<1x32xf32, #tpu.memory_space<vmem>>, %arg4: memref<32x96xbf16, #tpu.memory_space<vmem>>, %arg5: memref<32x32xbf16, #tpu.memory_space<vmem>>, %arg6: memref<1x32xf32, #tpu.memory_space<vmem>>, %arg7: memref<1x32xf32, #tpu.memory_space<vmem>>, %arg8: memref<1x32xf32, #tpu.memory_space<vmem>>, %arg9: memref<32x128xbf16, #tpu.memory_space<vmem>>, %arg10: memref<1x128xf32, #tpu.memory_space<vmem>>, %arg11: memref<128x32xbf16, #tpu.memory_space<vmem>>, %arg12: memref<1x32xf32, #tpu.memory_space<vmem>>, %arg13: memref<1x16x32xf32, #tpu.memory_space<vmem>>, %arg14: memref<16x32xbf16, #tpu.memory_space<vmem>>) attributes {dimension_semantics = [#tpu.dimension_semantics<parallel>], iteration_bounds = array<i64: 2>, scalar_prefetch = 0 : i64, scratch_operands = 1 : i64, tpu.core_type = #tpu.core_type<tc>, window_params = [{transform_indices = @transform_0, window_bounds = array<i64: 1, 16, 32>}, {pipeline_mode = #tpu.pipeline_mode<synchronous>, transform_indices = @transform_1, window_bounds = array<i64: 1, 32>}, {pipeline_mode = #tpu.pipeline_mode<synchronous>, transform_indices = @transform_2, window_bounds = array<i64: 1, 32>}, {pipeline_mode = #tpu.pipeline_mode<synchronous>, transform_indices = @transform_3, window_bounds = array<i64: 32, 96>}, {pipeline_mode = #tpu.pipeline_mode<synchronous>, transform_indices = @transform_4, window_bounds = array<i64: 32, 32>}, {pipeline_mode = #tpu.pipeline_mode<synchronous>, transform_indices = @transform_5, window_bounds = array<i64: 1, 32>}, {pipeline_mode = #tpu.pipeline_mode<synchronous>, transform_indices = @transform_6, window_bounds = array<i64: 1, 32>}, {pipeline_mode = #tpu.pipeline_mode<synchronous>, transform_indices = @transform_7, window_bounds = array<i64: 1, 32>}, {pipeline_mode = #tpu.pipeline_mode<synchronous>, transform_indices = @transform_8, window_bounds = array<i64: 32, 128>}, {pipeline_mode = #tpu.pipeline_mode<synchronous>, transform_indices = @transform_9, window_bounds = array<i64: 1, 128>}, {pipeline_mode = #tpu.pipeline_mode<synchronous>, transform_indices = @transform_10, window_bounds = array<i64: 128, 32>}, {pipeline_mode = #tpu.pipeline_mode<synchronous>, transform_indices = @transform_11, window_bounds = array<i64: 1, 32>}, {transform_indices = @transform_12, window_bounds = array<i64: 1, 16, 32>}]} {
    %c0 = arith.constant 0 : index
    %c0_0 = arith.constant 0 : index
    %c0_1 = arith.constant 0 : index
    %0 = vector.load %arg1[%c0, %c0_0, %c0_1] : memref<1x16x32xf32, #tpu.memory_space<vmem>>, vector<1x16x32xf32>
    %1 = vector.shape_cast %0 : vector<1x16x32xf32> to vector<16x32xf32>
    %c0_2 = arith.constant 0 : index
    %c0_3 = arith.constant 0 : index
    %2 = vector.load %arg2[%c0_2, %c0_3] : memref<1x32xf32, #tpu.memory_space<vmem>>, vector<1x32xf32>
    %c0_4 = arith.constant 0 : index
    %c0_5 = arith.constant 0 : index
    %3 = vector.load %arg3[%c0_4, %c0_5] : memref<1x32xf32, #tpu.memory_space<vmem>>, vector<1x32xf32>
    %cst = arith.constant dense<0.000000e+00> : vector<16xf32>
    %4 = vector.multi_reduction <add>, %1, %cst [1] : vector<16x32xf32> to vector<16xf32>
    %5 = vector.shape_cast %4 : vector<16xf32> to vector<16x1xf32>
    %cst_6 = arith.constant 3.200000e+01 : f32
    %6 = vector.broadcast %cst_6 : f32 to vector<16x1xf32>
    %7 = arith.divf %5, %6 : vector<16x1xf32>
    %8 = arith.mulf %1, %1 : vector<16x32xf32>
    %cst_7 = arith.constant dense<0.000000e+00> : vector<16xf32>
    %9 = vector.multi_reduction <add>, %8, %cst_7 [1] : vector<16x32xf32> to vector<16xf32>
    %10 = vector.shape_cast %9 : vector<16xf32> to vector<16x1xf32>
    %cst_8 = arith.constant 3.200000e+01 : f32
    %11 = vector.broadcast %cst_8 : f32 to vector<16x1xf32>
    %12 = arith.divf %10, %11 : vector<16x1xf32>
    %13 = arith.mulf %7, %7 : vector<16x1xf32>
    %14 = arith.subf %12, %13 : vector<16x1xf32>
    %cst_9 = arith.constant 0.000000e+00 : f32
    %15 = vector.broadcast %cst_9 : f32 to vector<16x1xf32>
    %16 = arith.maximumf %14, %15 : vector<16x1xf32>
    %17 = vector.broadcast %7 : vector<16x1xf32> to vector<16x32xf32>
    %18 = arith.subf %1, %17 : vector<16x32xf32>
    %cst_10 = arith.constant 9.99999974E-6 : f32
    %19 = vector.broadcast %cst_10 : f32 to vector<16x1xf32>
    %20 = arith.addf %16, %19 : vector<16x1xf32>
    %21 = math.rsqrt %20 : vector<16x1xf32>
    %22 = vector.broadcast %21 : vector<16x1xf32> to vector<16x32xf32>
    %23 = arith.mulf %18, %22 : vector<16x32xf32>
    %24 = vector.broadcast %2 : vector<1x32xf32> to vector<16x32xf32>
    %25 = arith.mulf %23, %24 : vector<16x32xf32>
    %26 = vector.broadcast %3 : vector<1x32xf32> to vector<16x32xf32>
    %27 = arith.addf %25, %26 : vector<16x32xf32>
    %28 = arith.truncf %27 : vector<16x32xf32> to vector<16x32xbf16>
    %c0_11 = arith.constant 0 : index
    %c0_12 = arith.constant 0 : index
    %29 = vector.load %arg4[%c0_11, %c0_12] : memref<32x96xbf16, #tpu.memory_space<vmem>>, vector<32x96xbf16>
    %cst_13 = arith.constant dense<0.000000e+00> : vector<16x96xf32>
    %30 = tpu.matmul %28, %29, %cst_13 {dimension_numbers = #tpu.dot_dimension_numbers<[1], [0], [0], [1], [0, 0, 1, 1], [], []>} : vector<16x32xbf16>, vector<32x96xbf16>, vector<16x96xf32> -> vector<16x96xf32>
    %31 = arith.truncf %30 : vector<16x96xf32> to vector<16x96xbf16>
    %32 = vector.extract_strided_slice %31 {offsets = [0, 0], sizes = [16, 32], strides = [1, 1]} : vector<16x96xbf16> to vector<16x32xbf16>
    %33 = vector.extract_strided_slice %31 {offsets = [0, 32], sizes = [16, 32], strides = [1, 1]} : vector<16x96xbf16> to vector<16x32xbf16>
    %34 = vector.extract_strided_slice %31 {offsets = [0, 64], sizes = [16, 32], strides = [1, 1]} : vector<16x96xbf16> to vector<16x32xbf16>
    %35 = tpu.iota {dimensions = array<i32: 1>} : vector<1x16xi32>
    %c8_i32 = arith.constant 8 : i32
    %36 = vector.broadcast %c8_i32 : i32 to vector<1x16xi32>
    %37 = arith.cmpi sge, %35, %36 : vector<1x16xi32>
    %cst_14 = arith.constant -1.000000e+30 : f32
    %cst_15 = arith.constant 0.000000e+00 : f32
    %38 = vector.broadcast %cst_14 : f32 to vector<1x16xf32>
    %39 = vector.broadcast %cst_15 : f32 to vector<1x16xf32>
    %40 = arith.select %37, %38, %39 : vector<1x16xi1>, vector<1x16xf32>
    %41 = vector.extract_strided_slice %32 {offsets = [0, 0], sizes = [16, 8], strides = [1, 1]} : vector<16x32xbf16> to vector<16x8xbf16>
    %42 = vector.extract_strided_slice %33 {offsets = [0, 0], sizes = [16, 8], strides = [1, 1]} : vector<16x32xbf16> to vector<16x8xbf16>
    %cst_16 = arith.constant dense<0.000000e+00> : vector<16x16xf32>
    %43 = tpu.matmul %41, %42, %cst_16 {dimension_numbers = #tpu.dot_dimension_numbers<[1], [1], [0], [0], [0, 0, 1, 0], [], []>} : vector<16x8xbf16>, vector<16x8xbf16>, vector<16x16xf32> -> vector<16x16xf32>
    %44 = vector.broadcast %40 : vector<1x16xf32> to vector<16x16xf32>
    %45 = arith.addf %43, %44 : vector<16x16xf32>
    %cst_17 = arith.constant dense<0xFF800000> : vector<16xf32>
    %46 = vector.multi_reduction <maximumf>, %45, %cst_17 [1] : vector<16x16xf32> to vector<16xf32>
    %47 = vector.shape_cast %46 : vector<16xf32> to vector<16x1xf32>
    %48 = vector.broadcast %47 : vector<16x1xf32> to vector<16x16xf32>
    %49 = arith.subf %45, %48 : vector<16x16xf32>
    %50 = math.exp %49 : vector<16x16xf32>
    %cst_18 = arith.constant dense<0.000000e+00> : vector<16xf32>
    %51 = vector.multi_reduction <add>, %50, %cst_18 [1] : vector<16x16xf32> to vector<16xf32>
    %52 = vector.shape_cast %51 : vector<16xf32> to vector<16x1xf32>
    %53 = tpu.reciprocal %52 {approx = true} : vector<16x1xf32> -> vector<16x1xf32>
    %54 = arith.truncf %50 : vector<16x16xf32> to vector<16x16xbf16>
    %55 = vector.extract_strided_slice %34 {offsets = [0, 0], sizes = [16, 8], strides = [1, 1]} : vector<16x32xbf16> to vector<16x8xbf16>
    %cst_19 = arith.constant dense<0.000000e+00> : vector<16x8xf32>
    %56 = tpu.matmul %54, %55, %cst_19 {dimension_numbers = #tpu.dot_dimension_numbers<[1], [0], [0], [1], [0, 0, 1, 1], [], []>} : vector<16x16xbf16>, vector<16x8xbf16>, vector<16x8xf32> -> vector<16x8xf32>
    %57 = vector.broadcast %53 : vector<16x1xf32> to vector<16x8xf32>
    %58 = arith.mulf %56, %57 : vector<16x8xf32>
    %59 = arith.truncf %58 : vector<16x8xf32> to vector<16x8xbf16>
    %c0_20 = arith.constant 0 : index
    %c0_21 = arith.constant 0 : index
    %60 = vector.load %arg14[%c0_20, %c0_21] : memref<16x32xbf16, #tpu.memory_space<vmem>>, vector<16x8xbf16>
    tpu.vector_store %arg14[%c0_20, %c0_21], %59 {strides = array<i32>} : memref<16x32xbf16, #tpu.memory_space<vmem>>, vector<16x8xbf16>,
    %61 = vector.extract_strided_slice %32 {offsets = [0, 8], sizes = [16, 8], strides = [1, 1]} : vector<16x32xbf16> to vector<16x8xbf16>
    %62 = vector.extract_strided_slice %33 {offsets = [0, 8], sizes = [16, 8], strides = [1, 1]} : vector<16x32xbf16> to vector<16x8xbf16>
    %cst_22 = arith.constant dense<0.000000e+00> : vector<16x16xf32>
    %63 = tpu.matmul %61, %62, %cst_22 {dimension_numbers = #tpu.dot_dimension_numbers<[1], [1], [0], [0], [0, 0, 1, 0], [], []>} : vector<16x8xbf16>, vector<16x8xbf16>, vector<16x16xf32> -> vector<16x16xf32>
    %64 = vector.broadcast %40 : vector<1x16xf32> to vector<16x16xf32>
    %65 = arith.addf %63, %64 : vector<16x16xf32>
    %cst_23 = arith.constant dense<0xFF800000> : vector<16xf32>
    %66 = vector.multi_reduction <maximumf>, %65, %cst_23 [1] : vector<16x16xf32> to vector<16xf32>
    %67 = vector.shape_cast %66 : vector<16xf32> to vector<16x1xf32>
    %68 = vector.broadcast %67 : vector<16x1xf32> to vector<16x16xf32>
    %69 = arith.subf %65, %68 : vector<16x16xf32>
    %70 = math.exp %69 : vector<16x16xf32>
    %cst_24 = arith.constant dense<0.000000e+00> : vector<16xf32>
    %71 = vector.multi_reduction <add>, %70, %cst_24 [1] : vector<16x16xf32> to vector<16xf32>
    %72 = vector.shape_cast %71 : vector<16xf32> to vector<16x1xf32>
    %73 = tpu.reciprocal %72 {approx = true} : vector<16x1xf32> -> vector<16x1xf32>
    %74 = arith.truncf %70 : vector<16x16xf32> to vector<16x16xbf16>
    %75 = vector.extract_strided_slice %34 {offsets = [0, 8], sizes = [16, 8], strides = [1, 1]} : vector<16x32xbf16> to vector<16x8xbf16>
    %cst_25 = arith.constant dense<0.000000e+00> : vector<16x8xf32>
    %76 = tpu.matmul %74, %75, %cst_25 {dimension_numbers = #tpu.dot_dimension_numbers<[1], [0], [0], [1], [0, 0, 1, 1], [], []>} : vector<16x16xbf16>, vector<16x8xbf16>, vector<16x8xf32> -> vector<16x8xf32>
    %77 = vector.broadcast %73 : vector<16x1xf32> to vector<16x8xf32>
    %78 = arith.mulf %76, %77 : vector<16x8xf32>
    %79 = arith.truncf %78 : vector<16x8xf32> to vector<16x8xbf16>
    %c0_26 = arith.constant 0 : index
    %c8 = arith.constant 8 : index
    %80 = vector.load %arg14[%c0_26, %c8] : memref<16x32xbf16, #tpu.memory_space<vmem>>, vector<16x8xbf16>
    tpu.vector_store %arg14[%c0_26, %c8], %79 {strides = array<i32>} : memref<16x32xbf16, #tpu.memory_space<vmem>>, vector<16x8xbf16>,
    %81 = vector.extract_strided_slice %32 {offsets = [0, 16], sizes = [16, 8], strides = [1, 1]} : vector<16x32xbf16> to vector<16x8xbf16>
    %82 = vector.extract_strided_slice %33 {offsets = [0, 16], sizes = [16, 8], strides = [1, 1]} : vector<16x32xbf16> to vector<16x8xbf16>
    %cst_27 = arith.constant dense<0.000000e+00> : vector<16x16xf32>
    %83 = tpu.matmul %81, %82, %cst_27 {dimension_numbers = #tpu.dot_dimension_numbers<[1], [1], [0], [0], [0, 0, 1, 0], [], []>} : vector<16x8xbf16>, vector<16x8xbf16>, vector<16x16xf32> -> vector<16x16xf32>
    %84 = vector.broadcast %40 : vector<1x16xf32> to vector<16x16xf32>
    %85 = arith.addf %83, %84 : vector<16x16xf32>
    %cst_28 = arith.constant dense<0xFF800000> : vector<16xf32>
    %86 = vector.multi_reduction <maximumf>, %85, %cst_28 [1] : vector<16x16xf32> to vector<16xf32>
    %87 = vector.shape_cast %86 : vector<16xf32> to vector<16x1xf32>
    %88 = vector.broadcast %87 : vector<16x1xf32> to vector<16x16xf32>
    %89 = arith.subf %85, %88 : vector<16x16xf32>
    %90 = math.exp %89 : vector<16x16xf32>
    %cst_29 = arith.constant dense<0.000000e+00> : vector<16xf32>
    %91 = vector.multi_reduction <add>, %90, %cst_29 [1] : vector<16x16xf32> to vector<16xf32>
    %92 = vector.shape_cast %91 : vector<16xf32> to vector<16x1xf32>
    %93 = tpu.reciprocal %92 {approx = true} : vector<16x1xf32> -> vector<16x1xf32>
    %94 = arith.truncf %90 : vector<16x16xf32> to vector<16x16xbf16>
    %95 = vector.extract_strided_slice %34 {offsets = [0, 16], sizes = [16, 8], strides = [1, 1]} : vector<16x32xbf16> to vector<16x8xbf16>
    %cst_30 = arith.constant dense<0.000000e+00> : vector<16x8xf32>
    %96 = tpu.matmul %94, %95, %cst_30 {dimension_numbers = #tpu.dot_dimension_numbers<[1], [0], [0], [1], [0, 0, 1, 1], [], []>} : vector<16x16xbf16>, vector<16x8xbf16>, vector<16x8xf32> -> vector<16x8xf32>
    %97 = vector.broadcast %93 : vector<16x1xf32> to vector<16x8xf32>
    %98 = arith.mulf %96, %97 : vector<16x8xf32>
    %99 = arith.truncf %98 : vector<16x8xf32> to vector<16x8xbf16>
    %c0_31 = arith.constant 0 : index
    %c16 = arith.constant 16 : index
    %100 = vector.load %arg14[%c0_31, %c16] : memref<16x32xbf16, #tpu.memory_space<vmem>>, vector<16x8xbf16>
    tpu.vector_store %arg14[%c0_31, %c16], %99 {strides = array<i32>} : memref<16x32xbf16, #tpu.memory_space<vmem>>, vector<16x8xbf16>,
    %101 = vector.extract_strided_slice %32 {offsets = [0, 24], sizes = [16, 8], strides = [1, 1]} : vector<16x32xbf16> to vector<16x8xbf16>
    %102 = vector.extract_strided_slice %33 {offsets = [0, 24], sizes = [16, 8], strides = [1, 1]} : vector<16x32xbf16> to vector<16x8xbf16>
    %cst_32 = arith.constant dense<0.000000e+00> : vector<16x16xf32>
    %103 = tpu.matmul %101, %102, %cst_32 {dimension_numbers = #tpu.dot_dimension_numbers<[1], [1], [0], [0], [0, 0, 1, 0], [], []>} : vector<16x8xbf16>, vector<16x8xbf16>, vector<16x16xf32> -> vector<16x16xf32>
    %104 = vector.broadcast %40 : vector<1x16xf32> to vector<16x16xf32>
    %105 = arith.addf %103, %104 : vector<16x16xf32>
    %cst_33 = arith.constant dense<0xFF800000> : vector<16xf32>
    %106 = vector.multi_reduction <maximumf>, %105, %cst_33 [1] : vector<16x16xf32> to vector<16xf32>
    %107 = vector.shape_cast %106 : vector<16xf32> to vector<16x1xf32>
    %108 = vector.broadcast %107 : vector<16x1xf32> to vector<16x16xf32>
    %109 = arith.subf %105, %108 : vector<16x16xf32>
    %110 = math.exp %109 : vector<16x16xf32>
    %cst_34 = arith.constant dense<0.000000e+00> : vector<16xf32>
    %111 = vector.multi_reduction <add>, %110, %cst_34 [1] : vector<16x16xf32> to vector<16xf32>
    %112 = vector.shape_cast %111 : vector<16xf32> to vector<16x1xf32>
    %113 = tpu.reciprocal %112 {approx = true} : vector<16x1xf32> -> vector<16x1xf32>
    %114 = arith.truncf %110 : vector<16x16xf32> to vector<16x16xbf16>
    %115 = vector.extract_strided_slice %34 {offsets = [0, 24], sizes = [16, 8], strides = [1, 1]} : vector<16x32xbf16> to vector<16x8xbf16>
    %cst_35 = arith.constant dense<0.000000e+00> : vector<16x8xf32>
    %116 = tpu.matmul %114, %115, %cst_35 {dimension_numbers = #tpu.dot_dimension_numbers<[1], [0], [0], [1], [0, 0, 1, 1], [], []>} : vector<16x16xbf16>, vector<16x8xbf16>, vector<16x8xf32> -> vector<16x8xf32>
    %117 = vector.broadcast %113 : vector<16x1xf32> to vector<16x8xf32>
    %118 = arith.mulf %116, %117 : vector<16x8xf32>
    %119 = arith.truncf %118 : vector<16x8xf32> to vector<16x8xbf16>
    %c0_36 = arith.constant 0 : index
    %c24 = arith.constant 24 : index
    %120 = vector.load %arg14[%c0_36, %c24] : memref<16x32xbf16, #tpu.memory_space<vmem>>, vector<16x8xbf16>
    tpu.vector_store %arg14[%c0_36, %c24], %119 {strides = array<i32>} : memref<16x32xbf16, #tpu.memory_space<vmem>>, vector<16x8xbf16>,
    %c0_37 = arith.constant 0 : index
    %c0_38 = arith.constant 0 : index
    %121 = vector.load %arg14[%c0_37, %c0_38] : memref<16x32xbf16, #tpu.memory_space<vmem>>, vector<16x32xbf16>
    %c0_39 = arith.constant 0 : index
    %c0_40 = arith.constant 0 : index
    %122 = vector.load %arg5[%c0_39, %c0_40] : memref<32x32xbf16, #tpu.memory_space<vmem>>, vector<32x32xbf16>
    %cst_41 = arith.constant dense<0.000000e+00> : vector<16x32xf32>
    %123 = tpu.matmul %121, %122, %cst_41 {dimension_numbers = #tpu.dot_dimension_numbers<[1], [0], [0], [1], [0, 0, 1, 1], [], []>} : vector<16x32xbf16>, vector<32x32xbf16>, vector<16x32xf32> -> vector<16x32xf32>
    %124 = arith.addf %1, %123 : vector<16x32xf32>
    %c0_42 = arith.constant 0 : index
    %c0_43 = arith.constant 0 : index
    %125 = vector.load %arg6[%c0_42, %c0_43] : memref<1x32xf32, #tpu.memory_space<vmem>>, vector<1x32xf32>
    %126 = vector.broadcast %125 : vector<1x32xf32> to vector<16x32xf32>
    %127 = arith.addf %124, %126 : vector<16x32xf32>
    %c0_44 = arith.constant 0 : index
    %c0_45 = arith.constant 0 : index
    %128 = vector.load %arg7[%c0_44, %c0_45] : memref<1x32xf32, #tpu.memory_space<vmem>>, vector<1x32xf32>
    %c0_46 = arith.constant 0 : index
    %c0_47 = arith.constant 0 : index
    %129 = vector.load %arg8[%c0_46, %c0_47] : memref<1x32xf32, #tpu.memory_space<vmem>>, vector<1x32xf32>
    %cst_48 = arith.constant dense<0.000000e+00> : vector<16xf32>
    %130 = vector.multi_reduction <add>, %127, %cst_48 [1] : vector<16x32xf32> to vector<16xf32>
    %131 = vector.shape_cast %130 : vector<16xf32> to vector<16x1xf32>
    %cst_49 = arith.constant 3.200000e+01 : f32
    %132 = vector.broadcast %cst_49 : f32 to vector<16x1xf32>
    %133 = arith.divf %131, %132 : vector<16x1xf32>
    %134 = arith.mulf %127, %127 : vector<16x32xf32>
    %cst_50 = arith.constant dense<0.000000e+00> : vector<16xf32>
    %135 = vector.multi_reduction <add>, %134, %cst_50 [1] : vector<16x32xf32> to vector<16xf32>
    %136 = vector.shape_cast %135 : vector<16xf32> to vector<16x1xf32>
    %cst_51 = arith.constant 3.200000e+01 : f32
    %137 = vector.broadcast %cst_51 : f32 to vector<16x1xf32>
    %138 = arith.divf %136, %137 : vector<16x1xf32>
    %139 = arith.mulf %133, %133 : vector<16x1xf32>
    %140 = arith.subf %138, %139 : vector<16x1xf32>
    %cst_52 = arith.constant 0.000000e+00 : f32
    %141 = vector.broadcast %cst_52 : f32 to vector<16x1xf32>
    %142 = arith.maximumf %140, %141 : vector<16x1xf32>
    %143 = vector.broadcast %133 : vector<16x1xf32> to vector<16x32xf32>
    %144 = arith.subf %127, %143 : vector<16x32xf32>
    %cst_53 = arith.constant 9.99999974E-6 : f32
    %145 = vector.broadcast %cst_53 : f32 to vector<16x1xf32>
    %146 = arith.addf %142, %145 : vector<16x1xf32>
    %147 = math.rsqrt %146 : vector<16x1xf32>
    %148 = vector.broadcast %147 : vector<16x1xf32> to vector<16x32xf32>
    %149 = arith.mulf %144, %148 : vector<16x32xf32>
    %150 = vector.broadcast %128 : vector<1x32xf32> to vector<16x32xf32>
    %151 = arith.mulf %149, %150 : vector<16x32xf32>
    %152 = vector.broadcast %129 : vector<1x32xf32> to vector<16x32xf32>
    %153 = arith.addf %151, %152 : vector<16x32xf32>
    %154 = arith.truncf %153 : vector<16x32xf32> to vector<16x32xbf16>
    %c0_54 = arith.constant 0 : index
    %c0_55 = arith.constant 0 : index
    %155 = vector.load %arg9[%c0_54, %c0_55] : memref<32x128xbf16, #tpu.memory_space<vmem>>, vector<32x128xbf16>
    %cst_56 = arith.constant dense<0.000000e+00> : vector<16x128xf32>
    %156 = tpu.matmul %154, %155, %cst_56 {dimension_numbers = #tpu.dot_dimension_numbers<[1], [0], [0], [1], [0, 0, 1, 1], [], []>} : vector<16x32xbf16>, vector<32x128xbf16>, vector<16x128xf32> -> vector<16x128xf32>
    %c0_57 = arith.constant 0 : index
    %c0_58 = arith.constant 0 : index
    %157 = vector.load %arg10[%c0_57, %c0_58] : memref<1x128xf32, #tpu.memory_space<vmem>>, vector<1x128xf32>
    %158 = vector.broadcast %157 : vector<1x128xf32> to vector<16x128xf32>
    %159 = arith.addf %156, %158 : vector<16x128xf32>
    %cst_59 = arith.constant 5.000000e-01 : f32
    %160 = vector.broadcast %cst_59 : f32 to vector<16x128xf32>
    %161 = arith.mulf %160, %159 : vector<16x128xf32>
    %cst_60 = arith.constant 0.707106769 : f32
    %162 = vector.broadcast %cst_60 : f32 to vector<16x128xf32>
    %163 = arith.mulf %159, %162 : vector<16x128xf32>
    %164 = math.erf %163 : vector<16x128xf32>
    %cst_61 = arith.constant 1.000000e+00 : f32
    %165 = vector.broadcast %cst_61 : f32 to vector<16x128xf32>
    %166 = arith.addf %165, %164 : vector<16x128xf32>
    %167 = arith.mulf %161, %166 : vector<16x128xf32>
    %168 = arith.truncf %167 : vector<16x128xf32> to vector<16x128xbf16>
    %c0_62 = arith.constant 0 : index
    %c0_63 = arith.constant 0 : index
    %169 = vector.load %arg11[%c0_62, %c0_63] : memref<128x32xbf16, #tpu.memory_space<vmem>>, vector<128x32xbf16>
    %cst_64 = arith.constant dense<0.000000e+00> : vector<16x32xf32>
    %170 = tpu.matmul %168, %169, %cst_64 {dimension_numbers = #tpu.dot_dimension_numbers<[1], [0], [0], [1], [0, 0, 1, 1], [], []>} : vector<16x128xbf16>, vector<128x32xbf16>, vector<16x32xf32> -> vector<16x32xf32>
    %c0_65 = arith.constant 0 : index
    %c0_66 = arith.constant 0 : index
    %171 = vector.load %arg12[%c0_65, %c0_66] : memref<1x32xf32, #tpu.memory_space<vmem>>, vector<1x32xf32>
    %172 = vector.broadcast %171 : vector<1x32xf32> to vector<16x32xf32>
    %173 = arith.addf %170, %172 : vector<16x32xf32>
    %174 = arith.addf %127, %173 : vector<16x32xf32>
    %c0_67 = arith.constant 0 : index
    %c0_68 = arith.constant 0 : index
    %c0_69 = arith.constant 0 : index
    %175 = vector.load %arg13[%c0_67, %c0_68, %c0_69] : memref<1x16x32xf32, #tpu.memory_space<vmem>>, vector<1x16x32xf32>
    %176 = vector.shape_cast %175 : vector<1x16x32xf32> to vector<16x32xf32>
    %177 = vector.shape_cast %174 : vector<16x32xf32> to vector<1x16x32xf32>
    tpu.vector_store %arg13[%c0_67, %c0_68, %c0_69], %177 {strides = array<i32>} : memref<1x16x32xf32, #tpu.memory_space<vmem>>, vector<1x16x32xf32>,
    return
  }
  func.func @transform_0(%arg0: i32) -> (i32, i32, i32) {
    %c0_i32 = arith.constant 0 : i32
    %c0_i32_0 = arith.constant 0 : i32
    %c0_i32_1 = arith.constant 0 : i32
    return %arg0, %c0_i32, %c0_i32_0 : i32, i32, i32
  }
  func.func @transform_1(%arg0: i32) -> (i32, i32) {
    %c0_i32 = arith.constant 0 : i32
    %c0_i32_0 = arith.constant 0 : i32
    %c0_i32_1 = arith.constant 0 : i32
    return %c0_i32, %c0_i32_0 : i32, i32
  }
  func.func @transform_2(%arg0: i32) -> (i32, i32) {
    %c0_i32 = arith.constant 0 : i32
    %c0_i32_0 = arith.constant 0 : i32
    %c0_i32_1 = arith.constant 0 : i32
    return %c0_i32, %c0_i32_0 : i32, i32
  }
  func.func @transform_3(%arg0: i32) -> (i32, i32) {
    %c0_i32 = arith.constant 0 : i32
    %c0_i32_0 = arith.constant 0 : i32
    %c0_i32_1 = arith.constant 0 : i32
    return %c0_i32, %c0_i32_0 : i32, i32
  }
  func.func @transform_4(%arg0: i32) -> (i32, i32) {
    %c0_i32 = arith.constant 0 : i32
    %c0_i32_0 = arith.constant 0 : i32
    %c0_i32_1 = arith.constant 0 : i32
    return %c0_i32, %c0_i32_0 : i32, i32
  }
  func.func @transform_5(%arg0: i32) -> (i32, i32) {
    %c0_i32 = arith.constant 0 : i32
    %c0_i32_0 = arith.constant 0 : i32
    %c0_i32_1 = arith.constant 0 : i32
    return %c0_i32, %c0_i32_0 : i32, i32
  }
  func.func @transform_6(%arg0: i32) -> (i32, i32) {
    %c0_i32 = arith.constant 0 : i32
    %c0_i32_0 = arith.constant 0 : i32
    %c0_i32_1 = arith.constant 0 : i32
    return %c0_i32, %c0_i32_0 : i32, i32
  }
  func.func @transform_7(%arg0: i32) -> (i32, i32) {
    %c0_i32 = arith.constant 0 : i32
    %c0_i32_0 = arith.constant 0 : i32
    %c0_i32_1 = arith.constant 0 : i32
    return %c0_i32, %c0_i32_0 : i32, i32
  }
  func.func @transform_8(%arg0: i32) -> (i32, i32) {
    %c0_i32 = arith.constant 0 : i32
    %c0_i32_0 = arith.constant 0 : i32
    %c0_i32_1 = arith.constant 0 : i32
    return %c0_i32, %c0_i32_0 : i32, i32
  }
  func.func @transform_9(%arg0: i32) -> (i32, i32) {
    %c0_i32 = arith.constant 0 : i32
    %c0_i32_0 = arith.constant 0 : i32
    %c0_i32_1 = arith.constant 0 : i32
    return %c0_i32, %c0_i32_0 : i32, i32
  }
  func.func @transform_10(%arg0: i32) -> (i32, i32) {
    %c0_i32 = arith.constant 0 : i32
    %c0_i32_0 = arith.constant 0 : i32
    %c0_i32_1 = arith.constant 0 : i32
    return %c0_i32, %c0_i32_0 : i32, i32
  }
  func.func @transform_11(%arg0: i32) -> (i32, i32) {
    %c0_i32 = arith.constant 0 : i32
    %c0_i32_0 = arith.constant 0 : i32
    %c0_i32_1 = arith.constant 0 : i32
    return %c0_i32, %c0_i32_0 : i32, i32
  }
  func.func @transform_12(%arg0: i32) -> (i32, i32, i32) {
    %c0_i32 = arith.constant 0 : i32
    %c0_i32_0 = arith.constant 0 : i32
    %c0_i32_1 = arith.constant 0 : i32
    return %arg0, %c0_i32, %c0_i32_0 : i32, i32, i32
  }
}

</mosaic_0001>

<llo_original>
// kernel: vit_block.1
$region0: #{vit_block.1}
  #allocation0 [shape = 'u32[]', space=smem, size = 0x4, offset = 0x4, fixed_abs, tag = 'smem constant byte address 0x4 - core index']
  #allocation1 [shape = 'u32[72,128]{1,0:T(1,128)}', space=vmem, size = 0x9000, scoped, tag = 'internal scratch']
  #allocation2 [shape = 'bf16[16,32]{1,0:T(8,128)(2,1)}', space=vmem, size = 0x1000, scoped, tag = 'scratch operand']
  %s0 = inlined_call_operand.vmem [shape: f32[2,16,32], index: 0, kind: input, shape index: {}]
  %s1 = inlined_call_operand.vmem [shape: f32[1,32], index: 1, kind: input, shape index: {}]
  %s2 = inlined_call_operand.vmem [shape: f32[1,32], index: 2, kind: input, shape index: {}]
  %s3 = inlined_call_operand.vmem [shape: bf16[32,96], index: 3, kind: input, shape index: {}]
  %s4 = inlined_call_operand.vmem [shape: bf16[32,32], index: 4, kind: input, shape index: {}]
  %s5 = inlined_call_operand.vmem [shape: f32[1,32], index: 5, kind: input, shape index: {}]
  %s6 = inlined_call_operand.vmem [shape: f32[1,32], index: 6, kind: input, shape index: {}]
  %s7 = inlined_call_operand.vmem [shape: f32[1,32], index: 7, kind: input, shape index: {}]
  %s8 = inlined_call_operand.vmem [shape: bf16[32,128], index: 8, kind: input, shape index: {}]
  %s9 = inlined_call_operand.vmem [shape: f32[1,128], index: 9, kind: input, shape index: {}]
  %s10 = inlined_call_operand.vmem [shape: bf16[128,32], index: 10, kind: input, shape index: {}]
  %s11 = inlined_call_operand.vmem [shape: f32[1,32], index: 11, kind: input, shape index: {}]
  %s12 = inlined_call_operand.vmem [shape: f32[2,16,32], index: 12, kind: output, shape index: {}]
  %s13 = sld [smem:[#allocation0]]
  $region81: #{vit_block.1} parent=0
    _
  %s15 = ssub.s32 1, %s13
  %s16 = scalar_select 0, %s15, %s13
  loop: start=0, step=1, limit=4
  $region2: #{vit_block.1} parent=0 // loop_pre_header
    _
  $region3: #{vit_block.1} parent=0 // loop_header
    %s18 = sphi 0, %s22
    %p19 = scmp.ge.s32.totalorder %s18, 4
    %s28 = sphi 0, %s30
    %s31 = sphi 0, %s28
    %s32 = sphi 0, %s31
    %s48 = sphi 0, %s32
    %s52 = sphi 0, %s52
    %s54 = sphi 0, %s52
    %s55 = sphi 0, %s54
    %s69 = sphi 0, %s55
    %s73 = sphi 0, %s73
    %s75 = sphi 0, %s73
    %s76 = sphi 0, %s75
    %s90 = sphi 0, %s76
    %s94 = sphi 0, %s94
    %s96 = sphi 0, %s94
    %s97 = sphi 0, %s96
    %s111 = sphi 0, %s97
    %s115 = sphi 0, %s115
    %s117 = sphi 0, %s115
    %s118 = sphi 0, %s117
    %s132 = sphi 0, %s118
    %s136 = sphi 0, %s136
    %s138 = sphi 0, %s136
    %s139 = sphi 0, %s138
    %s153 = sphi 0, %s139
    %s157 = sphi 0, %s157
    %s159 = sphi 0, %s157
    %s160 = sphi 0, %s159
    %s174 = sphi 0, %s160
    %s178 = sphi 0, %s178
    %s180 = sphi 0, %s178
    %s181 = sphi 0, %s180
    %s195 = sphi 0, %s181
    %s199 = sphi 0, %s199
    %s201 = sphi 0, %s199
    %s202 = sphi 0, %s201
    %s216 = sphi 0, %s202
    %s220 = sphi 0, %s220
    %s222 = sphi 0, %s220
    %s223 = sphi 0, %s222
    %s237 = sphi 0, %s223
    %s241 = sphi 0, %s241
    %s243 = sphi 0, %s241
    %s244 = sphi 0, %s243
    %s258 = sphi 0, %s244
    %s262 = sphi 0, %s262
    %s264 = sphi 0, %s262
    %s265 = sphi 0, %s264
    %s279 = sphi 0, %s265
    %s285 = sphi 0, %s287
    %s288 = sphi 0, %s285
    %s289 = sphi 0, %s288
    %s305 = sphi 0, %s289
  $region4: #{vit_block.1} parent=0 // loop_header_branch
    %21 = sbr.rel (%p19) target = $region8
  $region5: #{vit_block.1} parent=0 // loop_body
    %s23 = ssub.s32 %s18, 1
    %s24 = ssub.s32 %s18, 2
    %s25 = sadd.s32 %s18, 1
    %s26 = ssub.s32 %s18, %s25
    %p27 = scmp.eq.s32.totalorder %s26, 0
    %s29 = sadd.s32 %s28, 1
    %s30 = scalar_select %p27, %s28, %s29
    %p33 = pneg %p27
    %p34 = scmp.eq.s32.totalorder %s18, 1
    %p35 = por %p33, %p34
    %p36 = scmp.ne.s32.totalorder %s28, %s31
    %p37 = scmp.eq.s32.totalorder %s18, 0
    %p38 = por %p36, %p37
    %p39 = scmp.ne.s32.totalorder %s28, %s31
    %p40 = scmp.eq.s32.totalorder %s23, 1
    %p41 = por %p39, %p40
    %p42 = scmp.ne.s32.totalorder %s31, %s32
    %p43 = scmp.eq.s32.totalorder %s23, 0
    %p44 = por %p42, %p43
    %p45 = scmp.ne.s32.totalorder %s31, %s32
    %p46 = scmp.eq.s32.totalorder %s24, 1
    %p47 = por %p45, %p46
    %p49 = scmp.ne.s32.totalorder %s32, %s48
    %p50 = scmp.eq.s32.totalorder %s24, 0
    %p51 = por %p49, %p50
    %s53 = sadd.s32 %s52, 1
    %p56 = scmp.eq.s32.totalorder %s18, 1
    %p57 = scmp.ne.s32.totalorder %s52, %s54
    %p58 = scmp.eq.s32.totalorder %s18, 0
    %p59 = por %p57, %p58
    %p60 = scmp.ne.s32.totalorder %s52, %s54
    %p61 = scmp.eq.s32.totalorder %s23, 1
    %p62 = por %p60, %p61
    %p63 = scmp.ne.s32.totalorder %s54, %s55
    %p64 = scmp.eq.s32.totalorder %s23, 0
    %p65 = por %p63, %p64
    %p66 = scmp.ne.s32.totalorder %s54, %s55
    %p67 = scmp.eq.s32.totalorder %s24, 1
    %p68 = por %p66, %p67
    %p70 = scmp.ne.s32.totalorder %s55, %s69
    %p71 = scmp.eq.s32.totalorder %s24, 0
    %p72 = por %p70, %p71
    %s74 = sadd.s32 %s73, 1
    %p77 = scmp.eq.s32.totalorder %s18, 1
    %p78 = scmp.ne.s32.totalorder %s73, %s75
    %p79 = scmp.eq.s32.totalorder %s18, 0
    %p80 = por %p78, %p79
    %p81 = scmp.ne.s32.totalorder %s73, %s75
    %p82 = scmp.eq.s32.totalorder %s23, 1
    %p83 = por %p81, %p82
    %p84 = scmp.ne.s32.totalorder %s75, %s76
    %p85 = scmp.eq.s32.totalorder %s23, 0
    %p86 = por %p84, %p85
    %p87 = scmp.ne.s32.totalorder %s75, %s76
    %p88 = scmp.eq.s32.totalorder %s24, 1
    %p89 = por %p87, %p88
    %p91 = scmp.ne.s32.totalorder %s76, %s90
    %p92 = scmp.eq.s32.totalorder %s24, 0
    %p93 = por %p91, %p92
    %s95 = sadd.s32 %s94, 1
    %p98 = scmp.eq.s32.totalorder %s18, 1
    %p99 = scmp.ne.s32.totalorder %s94, %s96
    %p100 = scmp.eq.s32.totalorder %s18, 0
    %p101 = por %p99, %p100
    %p102 = scmp.ne.s32.totalorder %s94, %s96
    %p103 = scmp.eq.s32.totalorder %s23, 1
    %p104 = por %p102, %p103
    %p105 = scmp.ne.s32.totalorder %s96, %s97
    %p106 = scmp.eq.s32.totalorder %s23, 0
    %p107 = por %p105, %p106
    %p108 = scmp.ne.s32.totalorder %s96, %s97
    %p109 = scmp.eq.s32.totalorder %s24, 1
    %p110 = por %p108, %p109
    %p112 = scmp.ne.s32.totalorder %s97, %s111
    %p113 = scmp.eq.s32.totalorder %s24, 0
    %p114 = por %p112, %p113
    %s116 = sadd.s32 %s115, 1
    %p119 = scmp.eq.s32.totalorder %s18, 1
    %p120 = scmp.ne.s32.totalorder %s115, %s117
    %p121 = scmp.eq.s32.totalorder %s18, 0
    %p122 = por %p120, %p121
    %p123 = scmp.ne.s32.totalorder %s115, %s117
    %p124 = scmp.eq.s32.totalorder %s23, 1
    %p125 = por %p123, %p124
    %p126 = scmp.ne.s32.totalorder %s117, %s118
    %p127 = scmp.eq.s32.totalorder %s23, 0
    %p128 = por %p126, %p127
    %p129 = scmp.ne.s32.totalorder %s117, %s118
    %p130 = scmp.eq.s32.totalorder %s24, 1
    %p131 = por %p129, %p130
    %p133 = scmp.ne.s32.totalorder %s118, %s132
    %p134 = scmp.eq.s32.totalorder %s24, 0
    %p135 = por %p133, %p134
    %s137 = sadd.s32 %s136, 1
    %p140 = scmp.eq.s32.totalorder %s18, 1
    %p141 = scmp.ne.s32.totalorder %s136, %s138
    %p142 = scmp.eq.s32.totalorder %s18, 0
    %p143 = por %p141, %p142
    %p144 = scmp.ne.s32.totalorder %s136, %s138
    %p145 = scmp.eq.s32.totalorder %s23, 1
    %p146 = por %p144, %p145
    %p147 = scmp.ne.s32.totalorder %s138, %s139
    %p148 = scmp.eq.s32.totalorder %s23, 0
    %p149 = por %p147, %p148
    %p150 = scmp.ne.s32.totalorder %s138, %s139
    %p151 = scmp.eq.s32.totalorder %s24, 1
    %p152 = por %p150, %p151
    %p154 = scmp.ne.s32.totalorder %s139, %s153
    %p155 = scmp.eq.s32.totalorder %s24, 0
    %p156 = por %p154, %p155
    %s158 = sadd.s32 %s157, 1
    %p161 = scmp.eq.s32.totalorder %s18, 1
    %p162 = scmp.ne.s32.totalorder %s157, %s159
    %p163 = scmp.eq.s32.totalorder %s18, 0
    %p164 = por %p162, %p163
    %p165 = scmp.ne.s32.totalorder %s157, %s159
    %p166 = scmp.eq.s32.totalorder %s23, 1
    %p167 = por %p165, %p166
    %p168 = scmp.ne.s32.totalorder %s159, %s160
    %p169 = scmp.eq.s32.totalorder %s23, 0
    %p170 = por %p168, %p169
    %p171 = scmp.ne.s32.totalorder %s159, %s160
    %p172 = scmp.eq.s32.totalorder %s24, 1
    %p173 = por %p171, %p172
    %p175 = scmp.ne.s32.totalorder %s160, %s174
    %p176 = scmp.eq.s32.totalorder %s24, 0
    %p177 = por %p175, %p176
    %s179 = sadd.s32 %s178, 1
    %p182 = scmp.eq.s32.totalorder %s18, 1
    %p183 = scmp.ne.s32.totalorder %s178, %s180
    %p184 = scmp.eq.s32.totalorder %s18, 0
    %p185 = por %p183, %p184
    %p186 = scmp.ne.s32.totalorder %s178, %s180
    %p187 = scmp.eq.s32.totalorder %s23, 1
    %p188 = por %p186, %p187
    %p189 = scmp.ne.s32.totalorder %s180, %s181
    %p190 = scmp.eq.s32.totalorder %s23, 0
    %p191 = por %p189, %p190
    %p192 = scmp.ne.s32.totalorder %s180, %s181
    %p193 = scmp.eq.s32.totalorder %s24, 1
    %p194 = por %p192, %p193
    %p196 = scmp.ne.s32.totalorder %s181, %s195
    %p197 = scmp.eq.s32.totalorder %s24, 0
    %p198 = por %p196, %p197
    %s200 = sadd.s32 %s199, 1
    %p203 = scmp.eq.s32.totalorder %s18, 1
    %p204 = scmp.ne.s32.totalorder %s199, %s201
    %p205 = scmp.eq.s32.totalorder %s18, 0
    %p206 = por %p204, %p205
    %p207 = scmp.ne.s32.totalorder %s199, %s201
    %p208 = scmp.eq.s32.totalorder %s23, 1
    %p209 = por %p207, %p208
    %p210 = scmp.ne.s32.totalorder %s201, %s202
    %p211 = scmp.eq.s32.totalorder %s23, 0
    %p212 = por %p210, %p211
    %p213 = scmp.ne.s32.totalorder %s201, %s202
    %p214 = scmp.eq.s32.totalorder %s24, 1
    %p215 = por %p213, %p214
    %p217 = scmp.ne.s32.totalorder %s202, %s216
    %p218 = scmp.eq.s32.totalorder %s24, 0
    %p219 = por %p217, %p218
    %s221 = sadd.s32 %s220, 1
    %p224 = scmp.eq.s32.totalorder %s18, 1
    %p225 = scmp.ne.s32.totalorder %s220, %s222
    %p226 = scmp.eq.s32.totalorder %s18, 0
    %p227 = por %p225, %p226
    %p228 = scmp.ne.s32.totalorder %s220, %s222
    %p229 = scmp.eq.s32.totalorder %s23, 1
    %p230 = por %p228, %p229
    %p231 = scmp.ne.s32.totalorder %s222, %s223
    %p232 = scmp.eq.s32.totalorder %s23, 0
    %p233 = por %p231, %p232
    %p234 = scmp.ne.s32.totalorder %s222, %s223
    %p235 = scmp.eq.s32.totalorder %s24, 1
    %p236 = por %p234, %p235
    %p238 = scmp.ne.s32.totalorder %s223, %s237
    %p239 = scmp.eq.s32.totalorder %s24, 0
    %p240 = por %p238, %p239
    %s242 = sadd.s32 %s241, 1
    %p245 = scmp.eq.s32.totalorder %s18, 1
    %p246 = scmp.ne.s32.totalorder %s241, %s243
    %p247 = scmp.eq.s32.totalorder %s18, 0
    %p248 = por %p246, %p247
    %p249 = scmp.ne.s32.totalorder %s241, %s243
    %p250 = scmp.eq.s32.totalorder %s23, 1
    %p251 = por %p249, %p250
    %p252 = scmp.ne.s32.totalorder %s243, %s244
    %p253 = scmp.eq.s32.totalorder %s23, 0
    %p254 = por %p252, %p253
    %p255 = scmp.ne.s32.totalorder %s243, %s244
    %p256 = scmp.eq.s32.totalorder %s24, 1
    %p257 = por %p255, %p256
    %p259 = scmp.ne.s32.totalorder %s244, %s258
    %p260 = scmp.eq.s32.totalorder %s24, 0
    %p261 = por %p259, %p260
    %s263 = sadd.s32 %s262, 1
    %p266 = scmp.eq.s32.totalorder %s18, 1
    %p267 = scmp.ne.s32.totalorder %s262, %s264
    %p268 = scmp.eq.s32.totalorder %s18, 0
    %p269 = por %p267, %p268
    %p270 = scmp.ne.s32.totalorder %s262, %s264
    %p271 = scmp.eq.s32.totalorder %s23, 1
    %p272 = por %p270, %p271
    %p273 = scmp.ne.s32.totalorder %s264, %s265
    %p274 = scmp.eq.s32.totalorder %s23, 0
    %p275 = por %p273, %p274
    %p276 = scmp.ne.s32.totalorder %s264, %s265
    %p277 = scmp.eq.s32.totalorder %s24, 1
    %p278 = por %p276, %p277
    %p280 = scmp.ne.s32.totalorder %s265, %s279
    %p281 = scmp.eq.s32.totalorder %s24, 0
    %p282 = por %p280, %p281
    %s283 = ssub.s32 %s18, %s25
    %p284 = scmp.eq.s32.totalorder %s283, 0
    %s286 = sadd.s32 %s285, 1
    %s287 = scalar_select %p284, %s285, %s286
    %p290 = pneg %p284
    %p291 = scmp.eq.s32.totalorder %s18, 1
    %p292 = por %p290, %p291
    %p293 = scmp.ne.s32.totalorder %s285, %s288
    %p294 = scmp.eq.s32.totalorder %s18, 0
    %p295 = por %p293, %p294
    %p296 = scmp.ne.s32.totalorder %s285, %s288
    %p297 = scmp.eq.s32.totalorder %s23, 1
    %p298 = por %p296, %p297
    %p299 = scmp.ne.s32.totalorder %s288, %s289
    %p300 = scmp.eq.s32.totalorder %s23, 0
    %p301 = por %p299, %p300
    %p302 = scmp.ne.s32.totalorder %s288, %s289
    %p303 = scmp.eq.s32.totalorder %s24, 1
    %p304 = por %p302, %p303
    %p306 = scmp.ne.s32.totalorder %s289, %s305
    %p307 = scmp.eq.s32.totalorder %s24, 0
    %p308 = por %p306, %p307
    %p309 = scmp.le.s32.totalorder 1, %s18
    %p310 = scmp.lt.s32.totalorder %s18, 3
    %p311 = pnand %p309, %p310
    %p312 = pneg %p311
    // Predicated region
    $region9: #{vit_block.1} parent=5 // pred_check
      _
    $region10: #{vit_block.1} parent=5 // pred_check_branch
      %314 = sbr.rel (%p311) target = $region12
    $region11: #{vit_block.1} parent=5 // pred_region
      %s315 = ssub.s32 %s18, 1
      // Predicated region
      $region13: #{vit_block.1} parent=11 // pred_check
        %p316 = pneg %p65
      $region14: #{vit_block.1} parent=11 // pred_check_branch
        %318 = sbr.rel (%p316) target = $region16
      $region15: #{vit_block.1} parent=11 // pred_region
        _
      $region16: #{vit_block.1} parent=11 // pred_fallthru
        _
      // Predicated region
      $region17: #{vit_block.1} parent=11 // pred_check
        %p319 = pneg %p86
      $region18: #{vit_block.1} parent=11 // pred_check_branch
        %321 = sbr.rel (%p319) target = $region20
      $region19: #{vit_block.1} parent=11 // pred_region
        _
      $region20: #{vit_block.1} parent=11 // pred_fallthru
        _
      // Predicated region
      $region21: #{vit_block.1} parent=11 // pred_check
        %p322 = pneg %p107
      $region22: #{vit_block.1} parent=11 // pred_check_branch
        %324 = sbr.rel (%p322) target = $region24
      $region23: #{vit_block.1} parent=11 // pred_region
        _
      $region24: #{vit_block.1} parent=11 // pred_fallthru
        _
      // Predicated region
      $region25: #{vit_block.1} parent=11 // pred_check
        %p325 = pneg %p128
      $region26: #{vit_block.1} parent=11 // pred_check_branch
        %327 = sbr.rel (%p325) target = $region28
      $region27: #{vit_block.1} parent=11 // pred_region
        _
      $region28: #{vit_block.1} parent=11 // pred_fallthru
        _
      // Predicated region
      $region29: #{vit_block.1} parent=11 // pred_check
        %p328 = pneg %p149
      $region30: #{vit_block.1} parent=11 // pred_check_branch
        %330 = sbr.rel (%p328) target = $region32
      $region31: #{vit_block.1} parent=11 // pred_region
        _
      $region32: #{vit_block.1} parent=11 // pred_fallthru
        _
      // Predicated region
      $region33: #{vit_block.1} parent=11 // pred_check
        %p331 = pneg %p170
      $region34: #{vit_block.1} parent=11 // pred_check_branch
        %333 = sbr.rel (%p331) target = $region36
      $region35: #{vit_block.1} parent=11 // pred_region
        _
      $region36: #{vit_block.1} parent=11 // pred_fallthru
        _
      // Predicated region
      $region37: #{vit_block.1} parent=11 // pred_check
        %p334 = pneg %p191
      $region38: #{vit_block.1} parent=11 // pred_check_branch
        %336 = sbr.rel (%p334) target = $region40
      $region39: #{vit_block.1} parent=11 // pred_region
        _
      $region40: #{vit_block.1} parent=11 // pred_fallthru
        _
      // Predicated region
      $region41: #{vit_block.1} parent=11 // pred_check
        %p337 = pneg %p212
      $region42: #{vit_block.1} parent=11 // pred_check_branch
        %339 = sbr.rel (%p337) target = $region44
      $region43: #{vit_block.1} parent=11 // pred_region
        _
      $region44: #{vit_block.1} parent=11 // pred_fallthru
        _
      // Predicated region
      $region45: #{vit_block.1} parent=11 // pred_check
        %p340 = pneg %p233
      $region46: #{vit_block.1} parent=11 // pred_check_branch
        %342 = sbr.rel (%p340) target = $region48
      $region47: #{vit_block.1} parent=11 // pred_region
        _
      $region48: #{vit_block.1} parent=11 // pred_fallthru
        _
      // Predicated region
      $region49: #{vit_block.1} parent=11 // pred_check
        %p343 = pneg %p254
      $region50: #{vit_block.1} parent=11 // pred_check_branch
        %345 = sbr.rel (%p343) target = $region52
      $region51: #{vit_block.1} parent=11 // pred_region
        _
      $region52: #{vit_block.1} parent=11 // pred_fallthru
        _
      // Predicated region
      $region53: #{vit_block.1} parent=11 // pred_check
        %p346 = pneg %p275
      $region54: #{vit_block.1} parent=11 // pred_check_branch
        %348 = sbr.rel (%p346) target = $region56
      $region55: #{vit_block.1} parent=11 // pred_region
        _
      $region56: #{vit_block.1} parent=11 // pred_fallthru
        _
    $region12: #{vit_block.1} parent=5 // pred_fallthru
      _
    %p349 = scmp.lt.s32.totalorder %s18, 2
    // Predicated region
    $region57: #{vit_block.1} parent=5 // pred_check
      %p350 = pneg %p349
    $region58: #{vit_block.1} parent=5 // pred_check_branch
      %352 = sbr.rel (%p350) target = $region60
    $region59: #{vit_block.1} parent=5 // pred_region
      // Predicated region
      $region61: #{vit_block.1} parent=59 // pred_check
        %p353 = pneg %p38
      $region62: #{vit_block.1} parent=59 // pred_check_branch
        %355 = sbr.rel (%p353) target = $region64
      $region63: #{vit_block.1} parent=59 // pred_region
        %p356 = scmp.lt.s32.totalorder %s18, 1
        %s357 = scalar_select %p356, %s18, 1
        %s358 = smul.addr %s357, 2
        %s359 = smul.addr %s358, 8
        %s360 = scalar_lea.vmem %s0, %s359
      $region64: #{vit_block.1} parent=59 // pred_fallthru
        _
    $region60: #{vit_block.1} parent=5 // pred_fallthru
      _
    %p361 = scmp.le.s32.totalorder 1, %s18
    %p362 = scmp.lt.s32.totalorder %s18, 3
    %p363 = pnand %p361, %p362
    %p364 = pneg %p363
    // Predicated region
    $region65: #{vit_block.1} parent=5 // pred_check
      _
    $region66: #{vit_block.1} parent=5 // pred_check_branch
      %366 = sbr.rel (%p363) target = $region68
    $region67: #{vit_block.1} parent=5 // pred_region
      %s367 = ssub.s32 %s18, 1
      %p368 = scmp.lt.s32.totalorder %s23, 1
      %s369 = scalar_select %p368, %s23, 1
      %s370 = smul.addr %s369, 2
      %s371 = smul.addr %s370, 8
      %s372 = scalar_lea.vmem %s0, %s371
      %p373 = pneg %p44
      %p374 = pneg %p41
      %p375 = pneg %p65
      %p376 = pneg %p62
      %p377 = pneg %p86
      %p378 = pneg %p83
      %p379 = pneg %p107
      %p380 = pneg %p104
      %p381 = pneg %p128
      %p382 = pneg %p125
      %p383 = pneg %p149
      %p384 = pneg %p146
      %p385 = pneg %p170
      %p386 = pneg %p167
      %p387 = pneg %p191
      %p388 = pneg %p188
      %p389 = pneg %p212
      %p390 = pneg %p209
      %p391 = pneg %p233
      %p392 = pneg %p230
      %p393 = pneg %p254
      %p394 = pneg %p251
      %p395 = pneg %p275
      %p396 = pneg %p272
      %p397 = pneg %p301
      %p398 = pneg %p298
      %p399 = scmp.lt.s32.totalorder %s23, 1
      %s400 = scalar_select %p399, %s23, 1
      %s401 = smul.addr %s400, 2
      %s402 = smul.addr %s401, 8
      %s403 = scalar_lea.vmem %s12, %s402
      %p404 = scmp.lt.s32.totalorder %s23, 1
      %s405 = scalar_select %p404, %s23, 1
      %s406 = smul.addr %s405, 2
      %s407 = smul.addr %s406, 8
      %s408 = scalar_lea.vmem %s0, %s407
      %p409 = scmp.lt.s32.totalorder %s23, 1
      %s410 = scalar_select %p409, %s23, 1
      %s411 = smul.addr %s410, 2
      %s412 = smul.addr %s411, 8
      %s413 = scalar_lea.vmem %s12, %s412
      %v415 = vld [vmem:[%s408] sm:$0xff]
      %v416 = vld [vmem:[%s408 + $0x8] sm:$0xff]
      %v417 = vld [vmem:[%s1] sm:$0x1]
      %v418 = vld [vmem:[%s2] sm:$0x1]
      %vm419 = vcmask 261120
      %v420 = vsel %vm419, %v415, 0.0
      %421 = vadd.xlane.f32.xlu0 %v420
      %v422 = vpop.xlane.xlu0 %421
      %v423 = vsel %vm419, %v416, 0.0
      %424 = vadd.xlane.f32.xlu0 %v423
      %v425 = vpop.xlane.xlu0 %424
      %v426 = vrcp.pop 32.0
      %v427 = vmul.f32 32.0, %v426
      %v428 = vsub.f32 1.0, %v427
      %v429 = vmul.f32 %v426, %v428
      %v430 = vadd.f32 %v426, %v429
      %vm431 = vweird.f32 %v426
      %v432 = vsel %vm431, %v426, %v430
      %v433 = vmul.f32 %v422, %v432
      %v434 = vmul.f32 %v425, %v432
      %v435 = vmul.f32 %v415, %v415
      %v436 = vmul.f32 %v416, %v416
      %v437 = vsel %vm419, %v435, 0.0
      %438 = vadd.xlane.f32.xlu0 %v437
      %v439 = vpop.xlane.xlu0 %438
      %v440 = vsel %vm419, %v436, 0.0
      %441 = vadd.xlane.f32.xlu0 %v440
      %v442 = vpop.xlane.xlu0 %441
      %v443 = vmul.f32 %v439, %v432
      %v444 = vmul.f32 %v442, %v432
      %v445 = vmul.f32 %v433, %v433
      %v446 = vmul.f32 %v434, %v434
      %v447 = vsub.f32 %v443, %v445
      %v448 = vsub.f32 %v444, %v446
      %v449 = vmax.f32 %v447, 0.0
      %v450 = vmax.f32 %v448, 0.0
      %v451 = vsub.f32 %v415, %v433
      %v452 = vsub.f32 %v416, %v434
      %v453 = vadd.f32 %v449, 1e-05
      %v454 = vadd.f32 %v450, 1e-05
      %v455 = vrsqrt.pop %v453
      %v456 = vmul.f32 %v455, %v453
      %v457 = vmul.f32 %v456, %v455
      %v458 = vmul.f32 0.5, %v457
      %v459 = vsub.f32 1.5, %v458
      %v460 = vmul.f32 %v455, %v459
      %vm461 = vweird.f32 %v453
      %vm462 = vweird.f32 %v455
      %vm463 = vmor %vm461, %vm462
      %v464 = vsel %vm463, %v455, %v460
      %v465 = vrsqrt.pop %v454
      %v466 = vmul.f32 %v465, %v454
      %v467 = vmul.f32 %v466, %v465
      %v468 = vmul.f32 0.5, %v467
      %v469 = vsub.f32 1.5, %v468
      %v470 = vmul.f32 %v465, %v469
      %vm471 = vweird.f32 %v454
      %vm472 = vweird.f32 %v465
      %vm473 = vmor %vm471, %vm472
      %v474 = vsel %vm473, %v465, %v470
      %v475 = vmul.f32 %v451, %v464
      %v476 = vmul.f32 %v452, %v474
      %v478 = vperm.slane %v417, 0
      %v480 = vmul.f32 %v475, %v478
      %v481 = vmul.f32 %v476, %v478
      %v483 = vperm.slane %v418, 0
      %v485 = vadd.f32 %v480, %v483
      %v486 = vadd.f32 %v481, %v483
      %v487 = vpack.c.bf16 %v486, %v485
      %v488 = vld [vmem:[%s3] sm:$0xf]
      %v489 = vld [vmem:[%s3 + $0x4] sm:$0xf]
      %v490 = vld [vmem:[%s3 + $0x8] sm:$0xf]
      %v491 = vld [vmem:[%s3 + $0xc] sm:$0xf]
      %v496 = vunpack.c.l.b16 %v488
      %v497 = vunpack.c.l.b16 %v489
      %v498 = vunpack.c.l.b16 %v490
      %v499 = vunpack.c.l.b16 %v491
      %v500 = vpack.c.b16 %v497, %v496
      %v501 = vpack.c.b16 %v499, %v498
      %v505 = vsel %vm419, %v487, 0
      %507 = vmatpush.bf16.msra.mxu0 0
      %508 = vmatpush.bf16.msra.mxu0 0
      %509 = vmatpush.bf16.msra.mxu0 0
      %510 = vmatpush.bf16.msra.mxu0 0
      %511 = vmatpush.bf16.msra.mxu0 0
      %512 = vmatpush.bf16.msra.mxu0 0
      %513 = vmatpush.bf16.msra.mxu0 %v501
      %514 = vmatpush.bf16.msra.mxu0 %v500
      %515 = vmatmul.bf16.gmra.mxu0 %v505
      %v516 = vpop.f32.mrf.mxu0
      %v517 = vadd.f32 0.0, %v516
      %v518 = vpop.f32.mrf.mxu0
      %v519 = vadd.f32 0.0, %v518
      %520 = vdwg.mxu0
      %v521 = vpack.c.bf16 %v517, %v517
      %v522 = vpack.c.bf16 %v519, %v519
      %v523 = vlaneseq
      %v524 = vand.u32 %v523, 127
      %vm525 = vcmp.ge.s32.totalorder %v524, 8
      %v526 = vsel %vm525, -1e+30, 0.0
      %v529 = vunpack.c.l.b16 %v521
      %v530 = vunpack.c.l.b16 %v522
      %v531 = vpack.c.b16 %v530, %v529
      %532 = vrot.lane.b32.xlu0 %v531, 96
      %v533 = vpop.permute.xlu0 %532
      %vm534 = vcmask 64512
      %v536 = vsel %vm534, %v531, 0
      %v539 = vsel %vm534, %v533, 0
      %541 = vmatpush.bf16.xpose.msra.mxu0 0
      %542 = vmatpush.bf16.xpose.msra.mxu0 0
      %543 = vmatpush.bf16.xpose.msra.mxu0 0
      %544 = vmatpush.bf16.xpose.msra.mxu0 0
      %545 = vmatpush.bf16.xpose.msra.mxu0 0
      %546 = vmatpush.bf16.xpose.msra.mxu0 0
      %547 = vmatpush.bf16.xpose.msra.mxu0 0
      %548 = vmatpush.bf16.xpose.msra.mxu0 %v539
      %549 = vmatmul.bf16.gmra.mxu0 %v536
      %v550 = vpop.f32.mrf.mxu0
      %v551 = vadd.f32 %v526, %v550
      %v552 = vpop.f32.mrf.mxu0
      %v553 = vadd.f32 %v526, %v552
      %554 = vdwg.mxu0
      %vm555 = vcmask 130048
      %v556 = vsel %vm555, %v551, -inf
      %557 = vmax.xlane.f32.xlu0 %v556
      %v558 = vpop.xlane.xlu0 %557
      %v559 = vsel %vm555, %v553, -inf
      %560 = vmax.xlane.f32.xlu0 %v559
      %v561 = vpop.xlane.xlu0 %560
      %v562 = vsub.f32 %v551, %v558
      %v563 = vsub.f32 %v553, %v561
      %v564 = vmul.f32 %v562, 1.442695
      %v565 = vpow.pop %v564
      %v566 = vmul.f32 %v563, 1.442695
      %v567 = vpow.pop %v566
      %v568 = vsel %vm555, %v565, 0.0
      %569 = vadd.xlane.f32.xlu0 %v568
      %v570 = vpop.xlane.xlu0 %569
      %v571 = vsel %vm555, %v567, 0.0
      %572 = vadd.xlane.f32.xlu0 %v571
      %v573 = vpop.xlane.xlu0 %572
      %v574 = vrcp.pop %v570
      %v575 = vrcp.pop %v573
      %v576 = vpack.c.bf16 %v567, %v565
      %577 = vrot.lane.b32.xlu0 %v531, 64
      %v578 = vpop.permute.xlu0 %577
      %v581 = vsel %vm555, %v576, 0
      %583 = vmatpush.bf16.msra.mxu0 0
      %584 = vmatpush.bf16.msra.mxu0 0
      %585 = vmatpush.bf16.msra.mxu0 0
      %586 = vmatpush.bf16.msra.mxu0 0
      %587 = vmatpush.bf16.msra.mxu0 0
      %588 = vmatpush.bf16.msra.mxu0 0
      %589 = vmatpush.bf16.msra.mxu0 0
      %590 = vmatpush.bf16.msra.mxu0 %v578
      %591 = vmatmul.bf16.gmra.mxu0 %v581
      %v592 = vpop.f32.mrf.mxu0
      %v593 = vadd.f32 0.0, %v592
      %v594 = vpop.f32.mrf.mxu0
      %v595 = vadd.f32 0.0, %v594
      %596 = vdwg.mxu0
      %v597 = vmul.f32 %v593, %v574
      %v598 = vmul.f32 %v595, %v575
      %v599 = vpack.c.bf16 %v597, %v597
      %v600 = vpack.c.bf16 %v598, %v598
      %vm601 = vcmask 60416
      %602 = vst.msk [vmem:[#allocation2] sm:$0xf] %vm601, %v599
      %603 = vst.msk [vmem:[#allocation2 + $0x4] sm:$0xf] %vm601, %v600
      %604 = vrot.lane.b32.xlu0 %v531, 120
      %v605 = vpop.permute.xlu0 %604
      %606 = vrot.lane.b32.xlu0 %v531, 88
      %v607 = vpop.permute.xlu0 %606
      %v609 = vsel %vm534, %v605, 0
      %v612 = vsel %vm534, %v607, 0
      %614 = vmatpush.bf16.xpose.msra.mxu0 0
      %615 = vmatpush.bf16.xpose.msra.mxu0 0
      %616 = vmatpush.bf16.xpose.msra.mxu0 0
      %617 = vmatpush.bf16.xpose.msra.mxu0 0
      %618 = vmatpush.bf16.xpose.msra.mxu0 0
      %619 = vmatpush.bf16.xpose.msra.mxu0 0
      %620 = vmatpush.bf16.xpose.msra.mxu0 0
      %621 = vmatpush.bf16.xpose.msra.mxu0 %v612
      %622 = vmatmul.bf16.gmra.mxu0 %v609
      %v623 = vpop.f32.mrf.mxu0
      %v624 = vadd.f32 %v526, %v623
      %v625 = vpop.f32.mrf.mxu0
      %v626 = vadd.f32 %v526, %v625
      %627 = vdwg.mxu0
      %v628 = vsel %vm555, %v624, -inf
      %629 = vmax.xlane.f32.xlu0 %v628
      %v630 = vpop.xlane.xlu0 %629
      %v631 = vsel %vm555, %v626, -inf
      %632 = vmax.xlane.f32.xlu0 %v631
      %v633 = vpop.xlane.xlu0 %632
      %v634 = vsub.f32 %v624, %v630
      %v635 = vsub.f32 %v626, %v633
      %v636 = vmul.f32 %v634, 1.442695
      %v637 = vpow.pop %v636
      %v638 = vmul.f32 %v635, 1.442695
      %v639 = vpow.pop %v638
      %v640 = vsel %vm555, %v637, 0.0
      %641 = vadd.xlane.f32.xlu0 %v640
      %v642 = vpop.xlane.xlu0 %641
      %v643 = vsel %vm555, %v639, 0.0
      %644 = vadd.xlane.f32.xlu0 %v643
      %v645 = vpop.xlane.xlu0 %644
      %v646 = vrcp.pop %v642
      %v647 = vrcp.pop %v645
      %v648 = vpack.c.bf16 %v639, %v637
      %649 = vrot.lane.b32.xlu0 %v531, 56
      %v650 = vpop.permute.xlu0 %649
      %v653 = vsel %vm555, %v648, 0
      %655 = vmatpush.bf16.msra.mxu0 0
      %656 = vmatpush.bf16.msra.mxu0 0
      %657 = vmatpush.bf16.msra.mxu0 0
      %658 = vmatpush.bf16.msra.mxu0 0
      %659 = vmatpush.bf16.msra.mxu0 0
      %660 = vmatpush.bf16.msra.mxu0 0
      %661 = vmatpush.bf16.msra.mxu0 0
      %662 = vmatpush.bf16.msra.mxu0 %v650
      %663 = vmatmul.bf16.gmra.mxu0 %v653
      %v664 = vpop.f32.mrf.mxu0
      %v665 = vadd.f32 0.0, %v664
      %v666 = vpop.f32.mrf.mxu0
      %v667 = vadd.f32 0.0, %v666
      %668 = vdwg.mxu0
      %v669 = vmul.f32 %v665, %v646
      %v670 = vmul.f32 %v667, %v647
      %v671 = vpack.c.bf16 %v669, %v669
      %v672 = vpack.c.bf16 %v670, %v670
      %675 = vrot.lane.b32.xlu0 %v671, 8
      %v676 = vpop.permute.xlu0 %675
      %677 = vrot.lane.b32.xlu0 %v672, 8
      %v678 = vpop.permute.xlu0 %677
      %vm681 = vcmask 126016
      %682 = vst.msk [vmem:[#allocation2] sm:$0xf] %vm681, %v676
      %683 = vst.msk [vmem:[#allocation2 + $0x4] sm:$0xf] %vm681, %v678
      %684 = vrot.lane.b32.xlu0 %v531, 112
      %v685 = vpop.permute.xlu0 %684
      %686 = vrot.lane.b32.xlu0 %v531, 80
      %v687 = vpop.permute.xlu0 %686
      %v689 = vsel %vm534, %v685, 0
      %v692 = vsel %vm534, %v687, 0
      %694 = vmatpush.bf16.xpose.msra.mxu0 0
      %695 = vmatpush.bf16.xpose.msra.mxu0 0
      %696 = vmatpush.bf16.xpose.msra.mxu0 0
      %697 = vmatpush.bf16.xpose.msra.mxu0 0
      %698 = vmatpush.bf16.xpose.msra.mxu0 0
      %699 = vmatpush.bf16.xpose.msra.mxu0 0
      %700 = vmatpush.bf16.xpose.msra.mxu0 0
      %701 = vmatpush.bf16.xpose.msra.mxu0 %v692
      %702 = vmatmul.bf16.gmra.mxu0 %v689
      %v703 = vpop.f32.mrf.mxu0
      %v704 = vadd.f32 %v526, %v703
      %v705 = vpop.f32.mrf.mxu0
      %v706 = vadd.f32 %v526, %v705
      %707 = vdwg.mxu0
      %v708 = vsel %vm555, %v704, -inf
      %709 = vmax.xlane.f32.xlu0 %v708
      %v710 = vpop.xlane.xlu0 %709
      %v711 = vsel %vm555, %v706, -inf
      %712 = vmax.xlane.f32.xlu0 %v711
      %v713 = vpop.xlane.xlu0 %712
      %v714 = vsub.f32 %v704, %v710
      %v715 = vsub.f32 %v706, %v713
      %v716 = vmul.f32 %v714, 1.442695
      %v717 = vpow.pop %v716
      %v718 = vmul.f32 %v715, 1.442695
      %v719 = vpow.pop %v718
      %v720 = vsel %vm555, %v717, 0.0
      %721 = vadd.xlane.f32.xlu0 %v720
      %v722 = vpop.xlane.xlu0 %721
      %v723 = vsel %vm555, %v719, 0.0
      %724 = vadd.xlane.f32.xlu0 %v723
      %v725 = vpop.xlane.xlu0 %724
      %v726 = vrcp.pop %v722
      %v727 = vrcp.pop %v725
      %v728 = vpack.c.bf16 %v719, %v717
      %729 = vrot.lane.b32.xlu0 %v531, 48
      %v730 = vpop.permute.xlu0 %729
      %v733 = vsel %vm555, %v728, 0
      %735 = vmatpush.bf16.msra.mxu0 0
      %736 = vmatpush.bf16.msra.mxu0 0
      %737 = vmatpush.bf16.msra.mxu0 0
      %738 = vmatpush.bf16.msra.mxu0 0
      %739 = vmatpush.bf16.msra.mxu0 0
      %740 = vmatpush.bf16.msra.mxu0 0
      %741 = vmatpush.bf16.msra.mxu0 0
      %742 = vmatpush.bf16.msra.mxu0 %v730
      %743 = vmatmul.bf16.gmra.mxu0 %v733
      %v744 = vpop.f32.mrf.mxu0
      %v745 = vadd.f32 0.0, %v744
      %v746 = vpop.f32.mrf.mxu0
      %v747 = vadd.f32 0.0, %v746
      %748 = vdwg.mxu0
      %v749 = vmul.f32 %v745, %v726
      %v750 = vmul.f32 %v747, %v727
      %v751 = vpack.c.bf16 %v749, %v749
      %v752 = vpack.c.bf16 %v750, %v750
      %755 = vrot.lane.b32.xlu0 %v751, 16
      %v756 = vpop.permute.xlu0 %755
      %757 = vrot.lane.b32.xlu0 %v752, 16
      %v758 = vpop.permute.xlu0 %757
      %vm761 = vcmask 191616
      %762 = vst.msk [vmem:[#allocation2] sm:$0xf] %vm761, %v756
      %763 = vst.msk [vmem:[#allocation2 + $0x4] sm:$0xf] %vm761, %v758
      %764 = vrot.lane.b32.xlu0 %v531, 104
      %v765 = vpop.permute.xlu0 %764
      %766 = vrot.lane.b32.xlu0 %v531, 72
      %v767 = vpop.permute.xlu0 %766
      %v769 = vsel %vm534, %v765, 0
      %v772 = vsel %vm534, %v767, 0
      %774 = vmatpush.bf16.xpose.msra.mxu0 0
      %775 = vmatpush.bf16.xpose.msra.mxu0 0
      %776 = vmatpush.bf16.xpose.msra.mxu0 0
      %777 = vmatpush.bf16.xpose.msra.mxu0 0
      %778 = vmatpush.bf16.xpose.msra.mxu0 0
      %779 = vmatpush.bf16.xpose.msra.mxu0 0
      %780 = vmatpush.bf16.xpose.msra.mxu0 0
      %781 = vmatpush.bf16.xpose.msra.mxu0 %v772
      %782 = vmatmul.bf16.gmra.mxu0 %v769
      %v783 = vpop.f32.mrf.mxu0
      %v784 = vadd.f32 %v526, %v783
      %v785 = vpop.f32.mrf.mxu0
      %v786 = vadd.f32 %v526, %v785
      %787 = vdwg.mxu0
      %v788 = vsel %vm555, %v784, -inf
      %789 = vmax.xlane.f32.xlu0 %v788
      %v790 = vpop.xlane.xlu0 %789
      %v791 = vsel %vm555, %v786, -inf
      %792 = vmax.xlane.f32.xlu0 %v791
      %v793 = vpop.xlane.xlu0 %792
      %v794 = vsub.f32 %v784, %v790
      %v795 = vsub.f32 %v786, %v793
      %v796 = vmul.f32 %v794, 1.442695
      %v797 = vpow.pop %v796
      %v798 = vmul.f32 %v795, 1.442695
      %v799 = vpow.pop %v798
      %v800 = vsel %vm555, %v797, 0.0
      %801 = vadd.xlane.f32.xlu0 %v800
      %v802 = vpop.xlane.xlu0 %801
      %v803 = vsel %vm555, %v799, 0.0
      %804 = vadd.xlane.f32.xlu0 %v803
      %v805 = vpop.xlane.xlu0 %804
      %v806 = vrcp.pop %v802
      %v807 = vrcp.pop %v805
      %v808 = vpack.c.bf16 %v799, %v797
      %809 = vrot.lane.b32.xlu0 %v531, 40
      %v810 = vpop.permute.xlu0 %809
      %v813 = vsel %vm555, %v808, 0
      %815 = vmatpush.bf16.msra.mxu0 0
      %816 = vmatpush.bf16.msra.mxu0 0
      %817 = vmatpush.bf16.msra.mxu0 0
      %818 = vmatpush.bf16.msra.mxu0 0
      %819 = vmatpush.bf16.msra.mxu0 0
      %820 = vmatpush.bf16.msra.mxu0 0
      %821 = vmatpush.bf16.msra.mxu0 0
      %822 = vmatpush.bf16.msra.mxu0 %v810
      %823 = vmatmul.bf16.gmra.mxu0 %v813
      %v824 = vpop.f32.mrf.mxu0
      %v825 = vadd.f32 0.0, %v824
      %v826 = vpop.f32.mrf.mxu0
      %v827 = vadd.f32 0.0, %v826
      %828 = vdwg.mxu0
      %v829 = vmul.f32 %v825, %v806
      %v830 = vmul.f32 %v827, %v807
      %v831 = vpack.c.bf16 %v829, %v829
      %v832 = vpack.c.bf16 %v830, %v830
      %835 = vrot.lane.b32.xlu0 %v831, 24
      %v836 = vpop.permute.xlu0 %835
      %837 = vrot.lane.b32.xlu0 %v832, 24
      %v838 = vpop.permute.xlu0 %837
      %vm841 = vcmask 257216
      %842 = vst.msk [vmem:[#allocation2] sm:$0xf] %vm841, %v836
      %843 = vst.msk [vmem:[#allocation2 + $0x4] sm:$0xf] %vm841, %v838
      %v844 = vld [vmem:[#allocation2] sm:$0xf]
      %v845 = vld [vmem:[#allocation2 + $0x4] sm:$0xf]
      %v846 = vld [vmem:[%s4] sm:$0xf]
      %v847 = vld [vmem:[%s4 + $0x4] sm:$0xf]
      %v848 = vld [vmem:[%s4 + $0x8] sm:$0xf]
      %v849 = vld [vmem:[%s4 + $0xc] sm:$0xf]
      %v852 = vunpack.c.l.b16 %v844
      %v853 = vunpack.c.l.b16 %v845
      %v854 = vpack.c.b16 %v853, %v852
      %v859 = vunpack.c.l.b16 %v846
      %v860 = vunpack.c.l.b16 %v847
      %v861 = vunpack.c.l.b16 %v848
      %v862 = vunpack.c.l.b16 %v849
      %v863 = vpack.c.b16 %v860, %v859
      %v864 = vpack.c.b16 %v862, %v861
      %v868 = vsel %vm419, %v854, 0
      %870 = vmatpush.bf16.msra.mxu0 0
      %871 = vmatpush.bf16.msra.mxu0 0
      %872 = vmatpush.bf16.msra.mxu0 0
      %873 = vmatpush.bf16.msra.mxu0 0
      %874 = vmatpush.bf16.msra.mxu0 0
      %875 = vmatpush.bf16.msra.mxu0 0
      %876 = vmatpush.bf16.msra.mxu0 %v864
      %877 = vmatpush.bf16.msra.mxu0 %v863
      %878 = vmatmul.bf16.gmra.mxu0 %v868
      %v879 = vpop.f32.mrf.mxu0
      %v880 = vadd.f32 0.0, %v879
      %v881 = vpop.f32.mrf.mxu0
      %v882 = vadd.f32 0.0, %v881
      %883 = vdwg.mxu0
      %v884 = vadd.f32 %v415, %v880
      %v885 = vadd.f32 %v416, %v882
      %v886 = vld [vmem:[%s5] sm:$0x1]
      %v888 = vperm.slane %v886, 0
      %v890 = vadd.f32 %v884, %v888
      %v891 = vadd.f32 %v885, %v888
      %v892 = vld [vmem:[%s6] sm:$0x1]
      %v893 = vld [vmem:[%s7] sm:$0x1]
      %v894 = vsel %vm419, %v890, 0.0
      %895 = vadd.xlane.f32.xlu0 %v894
      %v896 = vpop.xlane.xlu0 %895
      %v897 = vsel %vm419, %v891, 0.0
      %898 = vadd.xlane.f32.xlu0 %v897
      %v899 = vpop.xlane.xlu0 %898
      %v900 = vmul.f32 %v896, %v432
      %v901 = vmul.f32 %v899, %v432
      %v902 = vmul.f32 %v890, %v890
      %v903 = vmul.f32 %v891, %v891
      %v904 = vsel %vm419, %v902, 0.0
      %905 = vadd.xlane.f32.xlu0 %v904
      %v906 = vpop.xlane.xlu0 %905
      %v907 = vsel %vm419, %v903, 0.0
      %908 = vadd.xlane.f32.xlu0 %v907
      %v909 = vpop.xlane.xlu0 %908
      %v910 = vmul.f32 %v906, %v432
      %v911 = vmul.f32 %v909, %v432
      %v912 = vmul.f32 %v900, %v900
      %v913 = vmul.f32 %v901, %v901
      %v914 = vsub.f32 %v910, %v912
      %v915 = vsub.f32 %v911, %v913
      %v916 = vmax.f32 %v914, 0.0
      %v917 = vmax.f32 %v915, 0.0
      %v918 = vsub.f32 %v890, %v900
      %v919 = vsub.f32 %v891, %v901
      %v920 = vadd.f32 %v916, 1e-05
      %v921 = vadd.f32 %v917, 1e-05
      %v922 = vrsqrt.pop %v920
      %v923 = vmul.f32 %v922, %v920
      %v924 = vmul.f32 %v923, %v922
      %v925 = vmul.f32 0.5, %v924
      %v926 = vsub.f32 1.5, %v925
      %v927 = vmul.f32 %v922, %v926
      %vm928 = vweird.f32 %v920
      %vm929 = vweird.f32 %v922
      %vm930 = vmor %vm928, %vm929
      %v931 = vsel %vm930, %v922, %v927
      %v932 = vrsqrt.pop %v921
      %v933 = vmul.f32 %v932, %v921
      %v934 = vmul.f32 %v933, %v932
      %v935 = vmul.f32 0.5, %v934
      %v936 = vsub.f32 1.5, %v935
      %v937 = vmul.f32 %v932, %v936
      %vm938 = vweird.f32 %v921
      %vm939 = vweird.f32 %v932
      %vm940 = vmor %vm938, %vm939
      %v941 = vsel %vm940, %v932, %v937
      %v942 = vmul.f32 %v918, %v931
      %v943 = vmul.f32 %v919, %v941
      %v945 = vperm.slane %v892, 0
      %v947 = vmul.f32 %v942, %v945
      %v948 = vmul.f32 %v943, %v945
      %v950 = vperm.slane %v893, 0
      %v952 = vadd.f32 %v947, %v950
      %v953 = vadd.f32 %v948, %v950
      %v954 = vpack.c.bf16 %v953, %v952
      %v955 = vld [vmem:[%s8] sm:$0xf]
      %v956 = vld [vmem:[%s8 + $0x4] sm:$0xf]
      %v957 = vld [vmem:[%s8 + $0x8] sm:$0xf]
      %v958 = vld [vmem:[%s8 + $0xc] sm:$0xf]
      %v959 = vld [vmem:[%s9] sm:$0x1]
      %v961 = vperm.slane %v959, 0
      %v967 = vunpack.c.l.b16 %v955
      %v968 = vunpack.c.l.b16 %v956
      %v969 = vunpack.c.l.b16 %v957
      %v970 = vunpack.c.l.b16 %v958
      %v971 = vpack.c.b16 %v968, %v967
      %v972 = vpack.c.b16 %v970, %v969
      %v976 = vsel %vm419, %v954, 0
      %978 = vmatpush.bf16.msra.mxu0 0
      %979 = vmatpush.bf16.msra.mxu0 0
      %980 = vmatpush.bf16.msra.mxu0 0
      %981 = vmatpush.bf16.msra.mxu0 0
      %982 = vmatpush.bf16.msra.mxu0 0
      %983 = vmatpush.bf16.msra.mxu0 0
      %984 = vmatpush.bf16.msra.mxu0 %v972
      %985 = vmatpush.bf16.msra.mxu0 %v971
      %986 = vmatmul.bf16.gmra.mxu0 %v976
      %v987 = vpop.f32.mrf.mxu0
      %v988 = vadd.f32 %v961, %v987
      %v989 = vpop.f32.mrf.mxu0
      %v990 = vadd.f32 %v961, %v989
      %991 = vdwg.mxu0
      %v992 = vmul.f32 %v988, 0.5
      %v993 = vmul.f32 %v990, 0.5
      %v994 = vmul.f32 %v988, 0.70710677
      %v995 = vmul.f32 %v990, 0.70710677
      %v996 = vmul.f32 %v994, %v994
      %v997 = vmin.f32 16.0, %v996
      %v998 = vmul.f32 %v997, 2.1237322e-06
      %v999 = vadd.f32 %v998, 0.00028619796
      %v1000 = vmul.f32 %v997, %v999
      %v1001 = vadd.f32 %v1000, 0.0036580483
      %v1002 = vmul.f32 %v997, %v1001
      %v1003 = vadd.f32 %v1002, 0.05243302
      %v1004 = vmul.f32 %v997, %v1003
      %v1005 = vadd.f32 %v1004, 0.18741608
      %v1006 = vmul.f32 %v997, %v1005
      %v1007 = vadd.f32 %v1006, 1.1283791
      %v1008 = vmul.f32 %v994, %v1007
      %v1009 = vmul.f32 %v997, 3.8918573e-05
      %v1010 = vadd.f32 %v1009, 0.001143296
      %v1011 = vmul.f32 %v997, %v1010
      %v1012 = vadd.f32 %v1011, 0.014752088
      %v1013 = vmul.f32 %v997, %v1012
      %v1014 = vadd.f32 %v1013, 0.112945676
      %v1015 = vmul.f32 %v997, %v1014
      %v1016 = vadd.f32 %v1015, 0.4994258
      %v1017 = vmul.f32 %v997, %v1016
      %v1018 = vadd.f32 %v1017, 1.0
      %v1019 = vrcp.pop %v1018
      %v1020 = vmul.f32 %v1018, %v1019
      %v1021 = vsub.f32 1.0, %v1020
      %v1022 = vmul.f32 %v1019, %v1021
      %v1023 = vadd.f32 %v1019, %v1022
      %vm1024 = vweird.f32 %v1018
      %vm1025 = vweird.f32 %v1019
      %vm1026 = vmor %vm1024, %vm1025
      %v1027 = vsel %vm1026, %v1019, %v1023
      %v1028 = vand.u32 2147483647, %v1018
      %vm1029 = vcmp.eq.f32.partialorder %v1028, 8.507059e+37
      %v1030 = vand.u32 %v1018, 2147483648
      %v1031 = vor.u32 1.1754944e-38, %v1030
      %v1032 = vsel %vm1029, %v1031, %v1027
      %v1033 = vmul.f32 %v1008, %v1032
      %v1034 = vmin.f32 %v1033, 1.0
      %v1035 = vmax.f32 %v1034, -1.0
      %v1036 = vmul.f32 %v995, %v995
      %v1037 = vmin.f32 16.0, %v1036
      %v1038 = vmul.f32 %v1037, 2.1237322e-06
      %v1039 = vadd.f32 %v1038, 0.00028619796
      %v1040 = vmul.f32 %v1037, %v1039
      %v1041 = vadd.f32 %v1040, 0.0036580483
      %v1042 = vmul.f32 %v1037, %v1041
      %v1043 = vadd.f32 %v1042, 0.05243302
      %v1044 = vmul.f32 %v1037, %v1043
      %v1045 = vadd.f32 %v1044, 0.18741608
      %v1046 = vmul.f32 %v1037, %v1045
      %v1047 = vadd.f32 %v1046, 1.1283791
      %v1048 = vmul.f32 %v995, %v1047
      %v1049 = vmul.f32 %v1037, 3.8918573e-05
      %v1050 = vadd.f32 %v1049, 0.001143296
      %v1051 = vmul.f32 %v1037, %v1050
      %v1052 = vadd.f32 %v1051, 0.014752088
      %v1053 = vmul.f32 %v1037, %v1052
      %v1054 = vadd.f32 %v1053, 0.112945676
      %v1055 = vmul.f32 %v1037, %v1054
      %v1056 = vadd.f32 %v1055, 0.4994258
      %v1057 = vmul.f32 %v1037, %v1056
      %v1058 = vadd.f32 %v1057, 1.0
      %v1059 = vrcp.pop %v1058
      %v1060 = vmul.f32 %v1058, %v1059
      %v1061 = vsub.f32 1.0, %v1060
      %v1062 = vmul.f32 %v1059, %v1061
      %v1063 = vadd.f32 %v1059, %v1062
      %vm1064 = vweird.f32 %v1058
      %vm1065 = vweird.f32 %v1059
      %vm1066 = vmor %vm1064, %vm1065
      %v1067 = vsel %vm1066, %v1059, %v1063
      %v1068 = vand.u32 2147483647, %v1058
      %vm1069 = vcmp.eq.f32.partialorder %v1068, 8.507059e+37
      %v1070 = vand.u32 %v1058, 2147483648
      %v1071 = vor.u32 1.1754944e-38, %v1070
      %v1072 = vsel %vm1069, %v1071, %v1067
      %v1073 = vmul.f32 %v1048, %v1072
      %v1074 = vmin.f32 %v1073, 1.0
      %v1075 = vmax.f32 %v1074, -1.0
      %v1076 = vadd.f32 %v1035, 1.0
      %v1077 = vadd.f32 %v1075, 1.0
      %v1078 = vmul.f32 %v992, %v1076
      %v1079 = vmul.f32 %v993, %v1077
      %v1080 = vpack.c.bf16 %v1079, %v1078
      %v1081 = vld [vmem:[%s10] sm:$0xf]
      %v1082 = vld [vmem:[%s10 + $0x4] sm:$0xf]
      %v1083 = vld [vmem:[%s10 + $0x8] sm:$0xf]
      %v1084 = vld [vmem:[%s10 + $0xc] sm:$0xf]
      %v1085 = vld [vmem:[%s10 + $0x10] sm:$0xf]
      %v1086 = vld [vmem:[%s10 + $0x14] sm:$0xf]
      %v1087 = vld [vmem:[%s10 + $0x18] sm:$0xf]
      %v1088 = vld [vmem:[%s10 + $0x1c] sm:$0xf]
      %v1089 = vld [vmem:[%s10 + $0x20] sm:$0xf]
      %v1090 = vld [vmem:[%s10 + $0x24] sm:$0xf]
      %v1091 = vld [vmem:[%s10 + $0x28] sm:$0xf]
      %v1092 = vld [vmem:[%s10 + $0x2c] sm:$0xf]
      %v1093 = vld [vmem:[%s10 + $0x30] sm:$0xf]
      %v1094 = vld [vmem:[%s10 + $0x34] sm:$0xf]
      %v1095 = vld [vmem:[%s10 + $0x38] sm:$0xf]
      %v1096 = vld [vmem:[%s10 + $0x3c] sm:$0xf]
      %v1097 = vld [vmem:[%s11] sm:$0x1]
      %v1099 = vperm.slane %v1097, 0
      %v1117 = vunpack.c.l.b16 %v1081
      %v1118 = vunpack.c.l.b16 %v1082
      %v1119 = vunpack.c.l.b16 %v1083
      %v1120 = vunpack.c.l.b16 %v1084
      %v1121 = vunpack.c.l.b16 %v1085
      %v1122 = vunpack.c.l.b16 %v1086
      %v1123 = vunpack.c.l.b16 %v1087
      %v1124 = vunpack.c.l.b16 %v1088
      %v1125 = vunpack.c.l.b16 %v1089
      %v1126 = vunpack.c.l.b16 %v1090
      %v1127 = vunpack.c.l.b16 %v1091
      %v1128 = vunpack.c.l.b16 %v1092
      %v1129 = vunpack.c.l.b16 %v1093
      %v1130 = vunpack.c.l.b16 %v1094
      %v1131 = vunpack.c.l.b16 %v1095
      %v1132 = vunpack.c.l.b16 %v1096
      %v1133 = vpack.c.b16 %v1118, %v1117
      %v1134 = vpack.c.b16 %v1120, %v1119
      %v1135 = vpack.c.b16 %v1122, %v1121
      %v1136 = vpack.c.b16 %v1124, %v1123
      %v1137 = vpack.c.b16 %v1126, %v1125
      %v1138 = vpack.c.b16 %v1128, %v1127
      %v1139 = vpack.c.b16 %v1130, %v1129
      %v1140 = vpack.c.b16 %v1132, %v1131
      %1149 = vmatpush.bf16.msra.mxu0 %v1140
      %1150 = vmatpush.bf16.msra.mxu0 %v1139
      %1151 = vmatpush.bf16.msra.mxu0 %v1138
      %1152 = vmatpush.bf16.msra.mxu0 %v1137
      %1153 = vmatpush.bf16.msra.mxu0 %v1136
      %1154 = vmatpush.bf16.msra.mxu0 %v1135
      %1155 = vmatpush.bf16.msra.mxu0 %v1134
      %1156 = vmatpush.bf16.msra.mxu0 %v1133
      %1157 = vmatmul.bf16.gmra.mxu0 %v1080
      %v1158 = vpop.f32.mrf.mxu0
      %v1159 = vadd.f32 %v1099, %v1158
      %v1160 = vpop.f32.mrf.mxu0
      %v1161 = vadd.f32 %v1099, %v1160
      %1162 = vdwg.mxu0
      %v1163 = vadd.f32 %v890, %v1159
      %v1164 = vadd.f32 %v891, %v1161
      %1165 = vst.msk [vmem:[%s413] sm:$0xff] %vm419, %v1163
      %1166 = vst.msk [vmem:[%s413 + $0x8] sm:$0xff] %vm419, %v1164
      %p1167 = scmp.lt.s32.totalorder %s23, 1
      %s1168 = scalar_select %p1167, %s23, 1
      %s1169 = smul.addr %s1168, 2
      %s1170 = smul.addr %s1169, 8
      %s1171 = scalar_lea.vmem %s12, %s1170
      // Predicated region
      $region69: #{vit_block.1} parent=67 // pred_check
        %p1172 = pneg %p298
      $region70: #{vit_block.1} parent=67 // pred_check_branch
        %1174 = sbr.rel (%p1172) target = $region72
      $region71: #{vit_block.1} parent=67 // pred_region
        _
      $region72: #{vit_block.1} parent=67 // pred_fallthru
        _
    $region68: #{vit_block.1} parent=5 // pred_fallthru
      _
    %p1175 = scmp.le.s32.totalorder 2, %s18
    // Predicated region
    $region73: #{vit_block.1} parent=5 // pred_check
      %p1176 = pneg %p1175
    $region74: #{vit_block.1} parent=5 // pred_check_branch
      %1178 = sbr.rel (%p1176) target = $region76
    $region75: #{vit_block.1} parent=5 // pred_region
      %s1179 = ssub.s32 %s18, 2
      // Predicated region
      $region77: #{vit_block.1} parent=75 // pred_check
        %p1180 = pneg %p304
      $region78: #{vit_block.1} parent=75 // pred_check_branch
        %1182 = sbr.rel (%p1180) target = $region80
      $region79: #{vit_block.1} parent=75 // pred_region
        %p1183 = scmp.lt.s32.totalorder %s24, 1
        %s1184 = scalar_select %p1183, %s24, 1
        %s1185 = smul.addr %s1184, 2
        %s1186 = smul.addr %s1185, 8
        %s1187 = scalar_lea.vmem %s12, %s1186
      $region80: #{vit_block.1} parent=75 // pred_fallthru
        _
    $region76: #{vit_block.1} parent=5 // pred_fallthru
      _
  $region6: #{vit_block.1} parent=0 // loop_footer
    %s22 = sadd.s32 1, %s18
  $region7: #{vit_block.1} parent=0 // loop_footer_branch
    %17 = sbr.rel target = $region3
  $region8: #{vit_block.1} parent=0 // loop_exit
    _

</llo_original>
